<compile_context>
chip_gen: v6e
topology: v6e:2x2x1
jax: 0.10.0
libtpu: 0.0.40
codegen_flags: <defaults>
</compile_context>

<pallas_src>
import functools

import jax
import jax.numpy as jnp
from jax.experimental import pallas as pl
from jax.experimental.pallas import tpu as pltpu

_LANE = 128  # TPU lane width: output-channel tiles are kept lane-dense.


def _round_up(v, m):
    return (v + m - 1) // m * m


def _pad_last(a, target):
    return jnp.pad(a, [(0, 0)] * (a.ndim - 1) + [(0, target - a.shape[-1])])


# ----------------------------------------------------------------------------
# Phase decomposition, flat layout.
#
# A 3x3 / pad-1 / stride-s conv is decomposed into s^2 "phases" (disjoint
# sub-grids of the zero-padded input).  Each phase is stored flattened over
# (ext_h, ext_w) so that tap (ky,kx) of output pixel (y,x) reads flat element
#       off(ky,kx) + y*ext_w + x
# of one phase, i.e. every tap is a *contiguous* flat window -- no 2-D
# windowing or reshape inside the kernel.  The kernel therefore computes
# ext_w = wo + 2//s output columns per row; the <=2 extra (garbage) columns
# are discarded on host.  Total materialized activation bytes ~= one bf16
# copy of the zero-padded input (no 9x im2col blowup).
# ----------------------------------------------------------------------------
def _make_phases_flat(x_nhwc, stride, ho, wo):
    assert stride >= 1
    n, h, w, c = x_nhwc.shape
    max_d = 2 // stride                    # max in-phase tap offset (3x3 kernel)
    ext_h = ho + max_d
    ext_w = wo + max_d
    ph_h = max(stride * ext_h, h + 2)
    ph_w = max(stride * ext_w, w + 2)
    xp = jnp.pad(x_nhwc, ((0, 0), (1, ph_h - h - 1), (1, ph_w - w - 1), (0, 0)))
    phases = []
    for py in range(stride):
        for px in range(stride):
            ph = xp[:, py::stride, px::stride, :][:, :ext_h, :ext_w, :]
            ph = ph.reshape(n, ext_h * ext_w, c)
            # Tail pad so the largest tap window (offset max_d*ext_w + max_d)
            # fits; the padded zeros only feed garbage columns sliced on host.
            phases.append(jnp.pad(ph, ((0, 0), (0, max_d), (0, 0))))
    plan = []                              # tap t = ky*3+kx -> (phase, flat off)
    for ky in range(3):
        for kx in range(3):
            p = (ky % stride) * stride + (kx % stride)
            off = (ky // stride) * ext_w + (kx // stride)
            plan.append((p, off))
    return phases, plan, ext_w


# ----------------------------------------------------------------------------
# Pallas kernel factory: fused conv3x3 (single K=9*Cin MXU matmul) + folded BN
# [+ fused 1x1-conv/BN shortcut or identity residual] [+ ReLU].
# shortcut in {None, "proj", "identity"}.
# ----------------------------------------------------------------------------
def _make_conv_kernel(plan, n_phases, m, apply_relu, shortcut):
    def kernel(*refs):
        pos = 0
        phase_vals = [refs[pos + i][...] for i in range(n_phases)]  # (P,Cin) bf16
        pos += n_phases
        w_ref = refs[pos]; pos += 1          # (9*Cin, Ct) bf16
        scale = refs[pos][...]; pos += 1     # (1, Ct) f32
        bias = refs[pos][...]; pos += 1      # (1, Ct) f32
        xs_ref = ws_ref = sc_scale = sc_bias = None
        if shortcut == "proj":
            xs_ref = refs[pos]               # (m, Cin_x) bf16
            ws_ref = refs[pos + 1]           # (Cin_x, Ct) bf16
            sc_scale = refs[pos + 2][...]
            sc_bias = refs[pos + 3][...]
            pos += 4
        elif shortcut == "identity":
            xs_ref = refs[pos]; pos += 1     # (m, Ct) bf16
        o_ref = refs[pos]                    # (m, Ct)

        # Each tap is a contiguous flat window of a VMEM-resident phase block;
        # the 9 windows are concatenated along K so the conv is ONE MXU matmul
        # with K = 9*Cin (vs. 9 matmuls with K = Cin plus 8 VPU accumulates).
        slabs = [phase_vals[p][off:off + m, :] for (p, off) in plan]
        lhs = jnp.concatenate(slabs, axis=-1)                  # (m, 9*Cin) bf16
        acc = jnp.dot(lhs, w_ref[...], preferred_element_type=jnp.float32)

        out = acc * scale + bias             # folded BatchNorm (f32 epilogue)

        if shortcut == "proj":               # fused Conv1x1(stride) + BN
            sc = jnp.dot(xs_ref[...], ws_ref[...],
                         preferred_element_type=jnp.float32)
            out = out + (sc * sc_scale + sc_bias)
        elif shortcut == "identity":         # residual add in f32
            out = out + xs_ref[...].astype(jnp.float32)

        if apply_relu:
            out = jnp.maximum(out, 0.0)
        o_ref[...] = out.astype(o_ref.dtype)

    return kernel


# ----------------------------------------------------------------------------
# Wrapper: one pallas_call = conv3x3(stride, pad=1) + BN [+ shortcut] [+ ReLU].
#   x_img : (N, H, W, Cin) activations (cast to bf16 here)
#   w_flat: (9*Cin, Cp) bf16, Cp % 128 == 0
# Returns (N, Ho, ext_w, Cp) `out_dtype`; caller keeps [:, :, :Wo, :Cout].
# ----------------------------------------------------------------------------
def conv3x3_bn(x_img, w_flat, scale, bias, *, stride, apply_relu,
               out_dtype=jnp.bfloat16, shortcut=None, xs_img=None, ws=None,
               sc_scale=None, sc_bias=None, cout_tile=_LANE):
    x_img = x_img.astype(jnp.bfloat16)
    n, h, w, cin = x_img.shape
    k9, cp = w_flat.shape
    assert k9 == 9 * cin and cp % cout_tile == 0
    ho = (h + 2 - 3) // stride + 1
    wo = (w + 2 - 3) // stride + 1

    phases, plan, ext_w = _make_phases_flat(x_img, stride, ho, wo)
    n_phases = len(phases)
    p_len = phases[0].shape[1]
    m = ho * ext_w
    nct = cp // cout_tile
    out_itemsize = jnp.dtype(out_dtype).itemsize

    # Grid-axis order: keep the heavier operand resident across the inner axis
    # (weights for deep small-spatial layers, activations for early layers).
    w_tile_bytes = k9 * cout_tile * 2
    act_img_bytes = n_phases * p_len * cin * 2
    ci_outer = (nct > 1) and (n > 1) and (w_tile_bytes > act_img_bytes)
    if ci_outer:
        grid = (nct, n)
        ni_of = lambda a, b: b
        ci_of = lambda a, b: a
    else:
        grid = (n, nct)
        ni_of = lambda a, b: a
        ci_of = lambda a, b: b

    in_specs, args = [], []
    for ph in phases:
        in_specs.append(pl.BlockSpec((None, p_len, cin),
                                     lambda a, b: (ni_of(a, b), 0, 0)))
        args.append(ph)

    in_specs.append(pl.BlockSpec((k9, cout_tile),
                                 lambda a, b: (0, ci_of(a, b))))
    args.append(w_flat)
    for vec in (scale, bias):
        in_specs.append(pl.BlockSpec((1, cout_tile),
                                     lambda a, b: (0, ci_of(a, b))))
        args.append(vec.reshape(1, cp).astype(jnp.float32))

    cin_x = 0
    if shortcut is not None:
        # Lay the shortcut operand out in the same (ho, ext_w) row layout as
        # the conv output (extra columns are zeros, discarded on host).
        assert xs_img.shape[:3] == (n, ho, wo)
        xs = jnp.pad(xs_img.astype(jnp.bfloat16),
                     ((0, 0), (0, 0), (0, ext_w - wo), (0, 0)))
        xs = xs.reshape(n, m, xs.shape[-1])
        if shortcut == "proj":
            cin_x = xs.shape[-1]
            in_specs.append(pl.BlockSpec((None, m, cin_x),
                                         lambda a, b: (ni_of(a, b), 0, 0)))
            args.append(xs)
            in_specs.append(pl.BlockSpec((cin_x, cout_tile),
                                         lambda a, b: (0, ci_of(a, b))))
            args.append(ws.astype(jnp.bfloat16))
            for vec in (sc_scale, sc_bias):
                in_specs.append(pl.BlockSpec((1, cout_tile),
                                             lambda a, b: (0, ci_of(a, b))))
                args.append(vec.reshape(1, cp).astype(jnp.float32))
        else:  # identity
            assert xs.shape[-1] == cp, "identity shortcut must be lane-padded"
            in_specs.append(pl.BlockSpec((None, m, cout_tile),
                                         lambda a, b: (ni_of(a, b), 0,
                                                       ci_of(a, b))))
            args.append(xs)

    out_specs = pl.BlockSpec((None, m, cout_tile),
                             lambda a, b: (ni_of(a, b), 0, ci_of(a, b)))

    # VMEM budget from the actual per-step blocks (x2: double buffering),
    # instead of a fixed 32 MiB (v7x has only 64 MiB physical VMEM).
    blk_bytes = (n_phases * p_len * cin * 2 + k9 * cout_tile * 2
                 + 2 * cout_tile * 4 + m * cout_tile * out_itemsize)
    if shortcut == "proj":
        blk_bytes += m * cin_x * 2 + cin_x * cout_tile * 2 + 2 * cout_tile * 4
    elif shortcut == "identity":
        blk_bytes += m * cout_tile * 2
    vmem_limit = int(min(max(2 * blk_bytes + (4 << 20), 32 << 20), 100 << 20))

    flops = 2 * n * m * k9 * cp
    if shortcut == "proj":
        flops += 2 * n * m * cin_x * cp
    bytes_accessed = (sum(int(a.size) * a.dtype.itemsize for a in args)
                      + n * m * cp * out_itemsize)

    out = pl.pallas_call(
        _make_conv_kernel(plan, n_phases, m, apply_relu, shortcut),
        grid=grid,
        in_specs=in_specs,
        out_specs=out_specs,
        out_shape=jax.ShapeDtypeStruct((n, m, cp), out_dtype),
        compiler_params=pltpu.CompilerParams(
            dimension_semantics=("parallel", "parallel"),
            vmem_limit_bytes=vmem_limit),
        cost_estimate=pl.CostEstimate(flops=int(flops), transcendentals=0,
                                      bytes_accessed=int(bytes_accessed)),
    )(*args)
    return out.reshape(n, ho, ext_w, cp)


# ----------------------------------------------------------------------------
# Parameter construction (deterministic, synthetic) + BN folding.
# ----------------------------------------------------------------------------
def _fold_bn(key, c, eps=1e-5):
    k1, k2, k3, k4 = jax.random.split(key, 4)
    gamma = 1.0 + 0.1 * jax.random.normal(k1, (c,), jnp.float32)
    beta = 0.1 * jax.random.normal(k2, (c,), jnp.float32)
    running_mean = 0.1 * jax.random.normal(k3, (c,), jnp.float32)
    running_var = jax.random.uniform(k4, (c,), jnp.float32, 0.5, 1.5)
    scale = gamma / jnp.sqrt(running_var + eps)
    bias = beta - running_mean * scale
    return scale, bias


def init_basic_block_params(key, in_channels, out_channels, stride):
    ks = jax.random.split(key, 6)
    cmid = out_channels
    cout = out_channels                      # expansion = 1
    cmidp = _round_up(cmid, _LANE)
    coutp = _round_up(cout, _LANE)

    w1 = 0.1 * jax.random.normal(ks[0], (3, 3, in_channels, cmid), jnp.float32)
    w2 = 0.1 * jax.random.normal(ks[1], (3, 3, cmid, cout), jnp.float32)

    # Weights flattened to (9*Cin, Cp) bf16 for the single K=9*Cin tap-concat
    # matmul; Cout is zero-padded to a lane multiple so every kernel store is
    # lane-dense (padded channels contribute exact zeros).
    w1_f = _pad_last(w1, cmidp).reshape(9 * in_channels, cmidp).astype(jnp.bfloat16)
    w2_f = _pad_last(w2, coutp).reshape(9 * cmid, coutp).astype(jnp.bfloat16)

    s1, b1 = _fold_bn(ks[2], cmid)
    s2, b2 = _fold_bn(ks[3], cout)
    params = {
        "stride": stride, "cin": in_channels,
        "cmid": cmid, "cmidp": cmidp, "cout": cout, "coutp": coutp,
        "w1": w1_f, "w2": w2_f,
        "scale1": _pad_last(s1, cmidp), "bias1": _pad_last(b1, cmidp),
        "scale2": _pad_last(s2, coutp), "bias2": _pad_last(b2, coutp),
    }
    if stride != 1 or in_channels != cout:
        ws = 0.1 * jax.random.normal(ks[4], (in_channels, cout), jnp.float32)
        ss, bs = _fold_bn(ks[5], cout)
        params["ws"] = _pad_last(ws, coutp).astype(jnp.bfloat16)
        params["scale_s"] = _pad_last(ss, coutp)
        params["bias_s"] = _pad_last(bs, coutp)
    else:
        params["ws"] = None
    return params


# ----------------------------------------------------------------------------
# BasicBlock forward (NCHW in / NCHW out, matching the PyTorch module).
# ----------------------------------------------------------------------------
def basic_block_forward(x_nchw, params):
    stride = params["stride"]
    cmid, cout, coutp = params["cmid"], params["cout"], params["coutp"]
    x = jnp.transpose(x_nchw, (0, 2, 3, 1)).astype(jnp.bfloat16)  # NCHW -> NHWC
    n, h, w, cin = x.shape
    ho = (h + 2 - 3) // stride + 1
    wo = (w + 2 - 3) // stride + 1

    # Kernel 1: conv3x3(stride) + BN1 + ReLU.  Output kept bf16 (largest
    # intermediate -> half the HBM write + read).
    h1 = conv3x3_bn(x, params["w1"], params["scale1"], params["bias1"],
                    stride=stride, apply_relu=True, out_dtype=jnp.bfloat16)
    # Drop garbage columns / lane padding; XLA fuses this slice with the
    # zero-pad + flatten of kernel 2's phase construction (single copy pass).
    # TODO(synk): have kernel 1 store straight into a halo-padded buffer to
    # remove even that copy.
    h1 = h1[:, :, :wo, :cmid]

    # Shortcut operand, fused into kernel 2 (no separate shortcut pallas_call).
    if params["ws"] is not None:
        xs_img = x[:, ::stride, ::stride, :][:, :ho, :wo, :]
        sc_kwargs = dict(shortcut="proj", xs_img=xs_img, ws=params["ws"],
                         sc_scale=params["scale_s"], sc_bias=params["bias_s"])
    else:
        assert cin == cout, "identity shortcut requires Cin == Cout"
        xs_img = _pad_last(x, coutp)         # bf16; lane-pad only if needed
        sc_kwargs = dict(shortcut="identity", xs_img=xs_img)

    # Kernel 2: conv3x3(1) + BN2 + shortcut-add + final ReLU.
    out = conv3x3_bn(h1, params["w2"], params["scale2"], params["bias2"],
                     stride=1, apply_relu=True, out_dtype=jnp.float32,
                     **sc_kwargs)
    out = out[:, :, :wo, :cout]              # drop garbage columns + lane pad
    return jnp.transpose(out, (0, 3, 1, 2))  # NHWC -> NCHW


# ----------------------------------------------------------------------------
# Pure-JAX reference (same bf16 quantization of inputs/weights, f32 elsewhere).
# ----------------------------------------------------------------------------
def basic_block_reference(x_nchw, params):
    stride, cmid, cout = params["stride"], params["cmid"], params["cout"]
    cin = x_nchw.shape[1]
    x = jnp.transpose(x_nchw, (0, 2, 3, 1)).astype(jnp.bfloat16).astype(jnp.float32)
    w1 = params["w1"].astype(jnp.float32).reshape(3, 3, cin, -1)[..., :cmid]
    w2 = params["w2"].astype(jnp.float32).reshape(3, 3, cmid, -1)[..., :cout]

    def conv(v, wk, s):
        return jax.lax.conv_general_dilated(
            v, wk, (s, s), ((1, 1), (1, 1)),
            dimension_numbers=("NHWC", "HWIO", "NHWC"))

    h1 = conv(x, w1, stride) * params["scale1"][:cmid] + params["bias1"][:cmid]
    h1 = jnp.maximum(h1, 0.0)
    h2 = conv(h1, w2, 1) * params["scale2"][:cout] + params["bias2"][:cout]
    if params["ws"] is not None:
        ws = params["ws"].astype(jnp.float32)[:, :cout]
        sc = jnp.einsum("nhwc,cd->nhwd", x[:, ::stride, ::stride, :], ws)
        sc = sc * params["scale_s"][:cout] + params["bias_s"][:cout]
    else:
        sc = x
    out = jnp.maximum(h2 + sc, 0.0)
    return jnp.transpose(out, (0, 3, 1, 2))


if __name__ == "__main__":
    key = jax.random.PRNGKey(0)
    k_x, k_p = jax.random.split(key)

    # batch=2, in_channels=4, spatial 16x16; out_channels=8, stride=2
    # -> exercises the fused 1x1-conv+BN shortcut path.  Output: (2, 8, 8, 8).
    in_channels, out_channels, stride = 4, 8, 2
    x = jax.random.normal(k_x, (2, in_channels, 16, 16), jnp.float32)

    params = init_basic_block_params(k_p, in_channels, out_channels, stride)

    fwd = jax.jit(functools.partial(basic_block_forward, params=params))
    y = fwd(x)
    jax.block_until_ready(y)

    assert y.shape == (2, out_channels, 16 // stride, 16 // stride), y.shape
    assert bool(jnp.all(y >= 0.0))           # final ReLU

    y_ref = basic_block_reference(x, params)
    err = jnp.max(jnp.abs(y - y_ref)) / (jnp.max(jnp.abs(y_ref)) + 1e-6)
    assert float(err) < 5e-2, f"kernel/reference mismatch: rel err {float(err)}"
    print("KERNEL_OK")
</pallas_src>

<mosaic_0001>
module attributes {stable_mosaic.version = 11 : i64} {
  func.func @kernel(%arg0: i32, %arg1: i32, %arg2: memref<1x82x4xbf16, #tpu.memory_space<vmem>>, %arg3: memref<1x82x4xbf16, #tpu.memory_space<vmem>>, %arg4: memref<1x82x4xbf16, #tpu.memory_space<vmem>>, %arg5: memref<1x82x4xbf16, #tpu.memory_space<vmem>>, %arg6: memref<36x128xbf16, #tpu.memory_space<vmem>>, %arg7: memref<1x128xf32, #tpu.memory_space<vmem>>, %arg8: memref<1x128xf32, #tpu.memory_space<vmem>>, %arg9: memref<1x72x128xbf16, #tpu.memory_space<vmem>>) attributes {dimension_semantics = [#tpu.dimension_semantics<parallel>, #tpu.dimension_semantics<parallel>], iteration_bounds = array<i64: 2, 1>, scalar_prefetch = 0 : i64, scratch_operands = 0 : i64, tpu.core_type = #tpu.core_type<tc>, window_params = [{transform_indices = @transform_0, window_bounds = array<i64: 1, 82, 4>}, {transform_indices = @transform_1, window_bounds = array<i64: 1, 82, 4>}, {transform_indices = @transform_2, window_bounds = array<i64: 1, 82, 4>}, {transform_indices = @transform_3, window_bounds = array<i64: 1, 82, 4>}, {transform_indices = @transform_4, window_bounds = array<i64: 36, 128>}, {transform_indices = @transform_5, window_bounds = array<i64: 1, 128>}, {transform_indices = @transform_6, window_bounds = array<i64: 1, 128>}, {transform_indices = @transform_7, window_bounds = array<i64: 1, 72, 128>}]} {
    %c0 = arith.constant 0 : index
    %c0_0 = arith.constant 0 : index
    %c0_1 = arith.constant 0 : index
    %0 = vector.load %arg2[%c0, %c0_0, %c0_1] : memref<1x82x4xbf16, #tpu.memory_space<vmem>>, vector<1x82x4xbf16>
    %1 = vector.shape_cast %0 : vector<1x82x4xbf16> to vector<82x4xbf16>
    %c0_2 = arith.constant 0 : index
    %c0_3 = arith.constant 0 : index
    %c0_4 = arith.constant 0 : index
    %2 = vector.load %arg3[%c0_2, %c0_3, %c0_4] : memref<1x82x4xbf16, #tpu.memory_space<vmem>>, vector<1x82x4xbf16>
    %3 = vector.shape_cast %2 : vector<1x82x4xbf16> to vector<82x4xbf16>
    %c0_5 = arith.constant 0 : index
    %c0_6 = arith.constant 0 : index
    %c0_7 = arith.constant 0 : index
    %4 = vector.load %arg4[%c0_5, %c0_6, %c0_7] : memref<1x82x4xbf16, #tpu.memory_space<vmem>>, vector<1x82x4xbf16>
    %5 = vector.shape_cast %4 : vector<1x82x4xbf16> to vector<82x4xbf16>
    %c0_8 = arith.constant 0 : index
    %c0_9 = arith.constant 0 : index
    %c0_10 = arith.constant 0 : index
    %6 = vector.load %arg5[%c0_8, %c0_9, %c0_10] : memref<1x82x4xbf16, #tpu.memory_space<vmem>>, vector<1x82x4xbf16>
    %7 = vector.shape_cast %6 : vector<1x82x4xbf16> to vector<82x4xbf16>
    %c0_11 = arith.constant 0 : index
    %c0_12 = arith.constant 0 : index
    %8 = vector.load %arg7[%c0_11, %c0_12] : memref<1x128xf32, #tpu.memory_space<vmem>>, vector<1x128xf32>
    %c0_13 = arith.constant 0 : index
    %c0_14 = arith.constant 0 : index
    %9 = vector.load %arg8[%c0_13, %c0_14] : memref<1x128xf32, #tpu.memory_space<vmem>>, vector<1x128xf32>
    %10 = vector.extract_strided_slice %1 {offsets = [0, 0], sizes = [72, 4], strides = [1, 1]} : vector<82x4xbf16> to vector<72x4xbf16>
    %11 = vector.extract_strided_slice %3 {offsets = [0, 0], sizes = [72, 4], strides = [1, 1]} : vector<82x4xbf16> to vector<72x4xbf16>
    %12 = vector.extract_strided_slice %1 {offsets = [1, 0], sizes = [72, 4], strides = [1, 1]} : vector<82x4xbf16> to vector<72x4xbf16>
    %13 = vector.extract_strided_slice %5 {offsets = [0, 0], sizes = [72, 4], strides = [1, 1]} : vector<82x4xbf16> to vector<72x4xbf16>
    %14 = vector.extract_strided_slice %7 {offsets = [0, 0], sizes = [72, 4], strides = [1, 1]} : vector<82x4xbf16> to vector<72x4xbf16>
    %15 = vector.extract_strided_slice %5 {offsets = [1, 0], sizes = [72, 4], strides = [1, 1]} : vector<82x4xbf16> to vector<72x4xbf16>
    %16 = vector.extract_strided_slice %1 {offsets = [9, 0], sizes = [72, 4], strides = [1, 1]} : vector<82x4xbf16> to vector<72x4xbf16>
    %17 = vector.extract_strided_slice %3 {offsets = [9, 0], sizes = [72, 4], strides = [1, 1]} : vector<82x4xbf16> to vector<72x4xbf16>
    %18 = vector.extract_strided_slice %1 {offsets = [10, 0], sizes = [72, 4], strides = [1, 1]} : vector<82x4xbf16> to vector<72x4xbf16>
    %19 = tpu.concatenate %10, %11, %12, %13, %14, %15, %16, %17, %18 in 1 : vector<72x4xbf16>, vector<72x4xbf16>, vector<72x4xbf16>, vector<72x4xbf16>, vector<72x4xbf16>, vector<72x4xbf16>, vector<72x4xbf16>, vector<72x4xbf16>, vector<72x4xbf16> -> vector<72x36xbf16>
    %c0_15 = arith.constant 0 : index
    %c0_16 = arith.constant 0 : index
    %20 = vector.load %arg6[%c0_15, %c0_16] : memref<36x128xbf16, #tpu.memory_space<vmem>>, vector<36x128xbf16>
    %cst = arith.constant dense<0.000000e+00> : vector<72x128xf32>
    %21 = tpu.matmul %19, %20, %cst {dimension_numbers = #tpu.dot_dimension_numbers<[1], [0], [0], [1], [0, 0, 1, 1], [], []>} : vector<72x36xbf16>, vector<36x128xbf16>, vector<72x128xf32> -> vector<72x128xf32>
    %22 = vector.broadcast %8 : vector<1x128xf32> to vector<72x128xf32>
    %23 = arith.mulf %21, %22 : vector<72x128xf32>
    %24 = vector.broadcast %9 : vector<1x128xf32> to vector<72x128xf32>
    %25 = arith.addf %23, %24 : vector<72x128xf32>
    %cst_17 = arith.constant 0.000000e+00 : f32
    %26 = vector.broadcast %cst_17 : f32 to vector<72x128xf32>
    %27 = arith.maximumf %25, %26 : vector<72x128xf32>
    %28 = arith.truncf %27 : vector<72x128xf32> to vector<72x128xbf16>
    %c0_18 = arith.constant 0 : index
    %c0_19 = arith.constant 0 : index
    %c0_20 = arith.constant 0 : index
    %29 = vector.load %arg9[%c0_18, %c0_19, %c0_20] : memref<1x72x128xbf16, #tpu.memory_space<vmem>>, vector<1x72x128xbf16>
    %30 = vector.shape_cast %29 : vector<1x72x128xbf16> to vector<72x128xbf16>
    %31 = vector.shape_cast %28 : vector<72x128xbf16> to vector<1x72x128xbf16>
    tpu.vector_store %arg9[%c0_18, %c0_19, %c0_20], %31 {strides = array<i32>} : memref<1x72x128xbf16, #tpu.memory_space<vmem>>, vector<1x72x128xbf16>,
    return
  }
  func.func @transform_0(%arg0: i32, %arg1: i32) -> (i32, i32, i32) {
    %c0_i32 = arith.constant 0 : i32
    %c0_i32_0 = arith.constant 0 : i32
    %c0_i32_1 = arith.constant 0 : i32
    return %arg0, %c0_i32, %c0_i32_0 : i32, i32, i32
  }
  func.func @transform_1(%arg0: i32, %arg1: i32) -> (i32, i32, i32) {
    %c0_i32 = arith.constant 0 : i32
    %c0_i32_0 = arith.constant 0 : i32
    %c0_i32_1 = arith.constant 0 : i32
    return %arg0, %c0_i32, %c0_i32_0 : i32, i32, i32
  }
  func.func @transform_2(%arg0: i32, %arg1: i32) -> (i32, i32, i32) {
    %c0_i32 = arith.constant 0 : i32
    %c0_i32_0 = arith.constant 0 : i32
    %c0_i32_1 = arith.constant 0 : i32
    return %arg0, %c0_i32, %c0_i32_0 : i32, i32, i32
  }
  func.func @transform_3(%arg0: i32, %arg1: i32) -> (i32, i32, i32) {
    %c0_i32 = arith.constant 0 : i32
    %c0_i32_0 = arith.constant 0 : i32
    %c0_i32_1 = arith.constant 0 : i32
    return %arg0, %c0_i32, %c0_i32_0 : i32, i32, i32
  }
  func.func @transform_4(%arg0: i32, %arg1: i32) -> (i32, i32) {
    %c0_i32 = arith.constant 0 : i32
    %c0_i32_0 = arith.constant 0 : i32
    return %c0_i32, %arg1 : i32, i32
  }
  func.func @transform_5(%arg0: i32, %arg1: i32) -> (i32, i32) {
    %c0_i32 = arith.constant 0 : i32
    %c0_i32_0 = arith.constant 0 : i32
    return %c0_i32, %arg1 : i32, i32
  }
  func.func @transform_6(%arg0: i32, %arg1: i32) -> (i32, i32) {
    %c0_i32 = arith.constant 0 : i32
    %c0_i32_0 = arith.constant 0 : i32
    return %c0_i32, %arg1 : i32, i32
  }
  func.func @transform_7(%arg0: i32, %arg1: i32) -> (i32, i32, i32) {
    %c0_i32 = arith.constant 0 : i32
    %c0_i32_0 = arith.constant 0 : i32
    return %arg0, %c0_i32, %arg1 : i32, i32, i32
  }
}

module attributes {stable_mosaic.version = 11 : i64} {
  func.func @kernel(%arg0: i32, %arg1: i32, %arg2: memref<1x102x8xbf16, #tpu.memory_space<vmem>>, %arg3: memref<72x128xbf16, #tpu.memory_space<vmem>>, %arg4: memref<1x128xf32, #tpu.memory_space<vmem>>, %arg5: memref<1x128xf32, #tpu.memory_space<vmem>>, %arg6: memref<1x80x4xbf16, #tpu.memory_space<vmem>>, %arg7: memref<4x128xbf16, #tpu.memory_space<vmem>>, %arg8: memref<1x128xf32, #tpu.memory_space<vmem>>, %arg9: memref<1x128xf32, #tpu.memory_space<vmem>>, %arg10: memref<1x80x128xf32, #tpu.memory_space<vmem>>) attributes {dimension_semantics = [#tpu.dimension_semantics<parallel>, #tpu.dimension_semantics<parallel>], iteration_bounds = array<i64: 2, 1>, scalar_prefetch = 0 : i64, scratch_operands = 0 : i64, tpu.core_type = #tpu.core_type<tc>, window_params = [{transform_indices = @transform_0, window_bounds = array<i64: 1, 102, 8>}, {transform_indices = @transform_1, window_bounds = array<i64: 72, 128>}, {transform_indices = @transform_2, window_bounds = array<i64: 1, 128>}, {transform_indices = @transform_3, window_bounds = array<i64: 1, 128>}, {transform_indices = @transform_4, window_bounds = array<i64: 1, 80, 4>}, {transform_indices = @transform_5, window_bounds = array<i64: 4, 128>}, {transform_indices = @transform_6, window_bounds = array<i64: 1, 128>}, {transform_indices = @transform_7, window_bounds = array<i64: 1, 128>}, {transform_indices = @transform_8, window_bounds = array<i64: 1, 80, 128>}]} {
    %c0 = arith.constant 0 : index
    %c0_0 = arith.constant 0 : index
    %c0_1 = arith.constant 0 : index
    %0 = vector.load %arg2[%c0, %c0_0, %c0_1] : memref<1x102x8xbf16, #tpu.memory_space<vmem>>, vector<1x102x8xbf16>
    %1 = vector.shape_cast %0 : vector<1x102x8xbf16> to vector<102x8xbf16>
    %c0_2 = arith.constant 0 : index
    %c0_3 = arith.constant 0 : index
    %2 = vector.load %arg4[%c0_2, %c0_3] : memref<1x128xf32, #tpu.memory_space<vmem>>, vector<1x128xf32>
    %c0_4 = arith.constant 0 : index
    %c0_5 = arith.constant 0 : index
    %3 = vector.load %arg5[%c0_4, %c0_5] : memref<1x128xf32, #tpu.memory_space<vmem>>, vector<1x128xf32>
    %c0_6 = arith.constant 0 : index
    %c0_7 = arith.constant 0 : index
    %4 = vector.load %arg8[%c0_6, %c0_7] : memref<1x128xf32, #tpu.memory_space<vmem>>, vector<1x128xf32>
    %c0_8 = arith.constant 0 : index
    %c0_9 = arith.constant 0 : index
    %5 = vector.load %arg9[%c0_8, %c0_9] : memref<1x128xf32, #tpu.memory_space<vmem>>, vector<1x128xf32>
    %6 = vector.extract_strided_slice %1 {offsets = [0, 0], sizes = [80, 8], strides = [1, 1]} : vector<102x8xbf16> to vector<80x8xbf16>
    %7 = vector.extract_strided_slice %1 {offsets = [1, 0], sizes = [80, 8], strides = [1, 1]} : vector<102x8xbf16> to vector<80x8xbf16>
    %8 = vector.extract_strided_slice %1 {offsets = [2, 0], sizes = [80, 8], strides = [1, 1]} : vector<102x8xbf16> to vector<80x8xbf16>
    %9 = vector.extract_strided_slice %1 {offsets = [10, 0], sizes = [80, 8], strides = [1, 1]} : vector<102x8xbf16> to vector<80x8xbf16>
    %10 = vector.extract_strided_slice %1 {offsets = [11, 0], sizes = [80, 8], strides = [1, 1]} : vector<102x8xbf16> to vector<80x8xbf16>
    %11 = vector.extract_strided_slice %1 {offsets = [12, 0], sizes = [80, 8], strides = [1, 1]} : vector<102x8xbf16> to vector<80x8xbf16>
    %12 = vector.extract_strided_slice %1 {offsets = [20, 0], sizes = [80, 8], strides = [1, 1]} : vector<102x8xbf16> to vector<80x8xbf16>
    %13 = vector.extract_strided_slice %1 {offsets = [21, 0], sizes = [80, 8], strides = [1, 1]} : vector<102x8xbf16> to vector<80x8xbf16>
    %14 = vector.extract_strided_slice %1 {offsets = [22, 0], sizes = [80, 8], strides = [1, 1]} : vector<102x8xbf16> to vector<80x8xbf16>
    %15 = tpu.concatenate %6, %7, %8, %9, %10, %11, %12, %13, %14 in 1 : vector<80x8xbf16>, vector<80x8xbf16>, vector<80x8xbf16>, vector<80x8xbf16>, vector<80x8xbf16>, vector<80x8xbf16>, vector<80x8xbf16>, vector<80x8xbf16>, vector<80x8xbf16> -> vector<80x72xbf16>
    %c0_10 = arith.constant 0 : index
    %c0_11 = arith.constant 0 : index
    %16 = vector.load %arg3[%c0_10, %c0_11] : memref<72x128xbf16, #tpu.memory_space<vmem>>, vector<72x128xbf16>
    %cst = arith.constant dense<0.000000e+00> : vector<80x128xf32>
    %17 = tpu.matmul %15, %16, %cst {dimension_numbers = #tpu.dot_dimension_numbers<[1], [0], [0], [1], [0, 0, 1, 1], [], []>} : vector<80x72xbf16>, vector<72x128xbf16>, vector<80x128xf32> -> vector<80x128xf32>
    %18 = vector.broadcast %2 : vector<1x128xf32> to vector<80x128xf32>
    %19 = arith.mulf %17, %18 : vector<80x128xf32>
    %20 = vector.broadcast %3 : vector<1x128xf32> to vector<80x128xf32>
    %21 = arith.addf %19, %20 : vector<80x128xf32>
    %c0_12 = arith.constant 0 : index
    %c0_13 = arith.constant 0 : index
    %c0_14 = arith.constant 0 : index
    %22 = vector.load %arg6[%c0_12, %c0_13, %c0_14] : memref<1x80x4xbf16, #tpu.memory_space<vmem>>, vector<1x80x4xbf16>
    %23 = vector.shape_cast %22 : vector<1x80x4xbf16> to vector<80x4xbf16>
    %c0_15 = arith.constant 0 : index
    %c0_16 = arith.constant 0 : index
    %24 = vector.load %arg7[%c0_15, %c0_16] : memref<4x128xbf16, #tpu.memory_space<vmem>>, vector<4x128xbf16>
    %cst_17 = arith.constant dense<0.000000e+00> : vector<80x128xf32>
    %25 = tpu.matmul %23, %24, %cst_17 {dimension_numbers = #tpu.dot_dimension_numbers<[1], [0], [0], [1], [0, 0, 1, 1], [], []>} : vector<80x4xbf16>, vector<4x128xbf16>, vector<80x128xf32> -> vector<80x128xf32>
    %26 = vector.broadcast %4 : vector<1x128xf32> to vector<80x128xf32>
    %27 = arith.mulf %25, %26 : vector<80x128xf32>
    %28 = vector.broadcast %5 : vector<1x128xf32> to vector<80x128xf32>
    %29 = arith.addf %27, %28 : vector<80x128xf32>
    %30 = arith.addf %21, %29 : vector<80x128xf32>
    %cst_18 = arith.constant 0.000000e+00 : f32
    %31 = vector.broadcast %cst_18 : f32 to vector<80x128xf32>
    %32 = arith.maximumf %30, %31 : vector<80x128xf32>
    %c0_19 = arith.constant 0 : index
    %c0_20 = arith.constant 0 : index
    %c0_21 = arith.constant 0 : index
    %33 = vector.load %arg10[%c0_19, %c0_20, %c0_21] : memref<1x80x128xf32, #tpu.memory_space<vmem>>, vector<1x80x128xf32>
    %34 = vector.shape_cast %33 : vector<1x80x128xf32> to vector<80x128xf32>
    %35 = vector.shape_cast %32 : vector<80x128xf32> to vector<1x80x128xf32>
    tpu.vector_store %arg10[%c0_19, %c0_20, %c0_21], %35 {strides = array<i32>} : memref<1x80x128xf32, #tpu.memory_space<vmem>>, vector<1x80x128xf32>,
    return
  }
  func.func @transform_0(%arg0: i32, %arg1: i32) -> (i32, i32, i32) {
    %c0_i32 = arith.constant 0 : i32
    %c0_i32_0 = arith.constant 0 : i32
    %c0_i32_1 = arith.constant 0 : i32
    return %arg0, %c0_i32, %c0_i32_0 : i32, i32, i32
  }
  func.func @transform_1(%arg0: i32, %arg1: i32) -> (i32, i32) {
    %c0_i32 = arith.constant 0 : i32
    %c0_i32_0 = arith.constant 0 : i32
    return %c0_i32, %arg1 : i32, i32
  }
  func.func @transform_2(%arg0: i32, %arg1: i32) -> (i32, i32) {
    %c0_i32 = arith.constant 0 : i32
    %c0_i32_0 = arith.constant 0 : i32
    return %c0_i32, %arg1 : i32, i32
  }
  func.func @transform_3(%arg0: i32, %arg1: i32) -> (i32, i32) {
    %c0_i32 = arith.constant 0 : i32
    %c0_i32_0 = arith.constant 0 : i32
    return %c0_i32, %arg1 : i32, i32
  }
  func.func @transform_4(%arg0: i32, %arg1: i32) -> (i32, i32, i32) {
    %c0_i32 = arith.constant 0 : i32
    %c0_i32_0 = arith.constant 0 : i32
    %c0_i32_1 = arith.constant 0 : i32
    return %arg0, %c0_i32, %c0_i32_0 : i32, i32, i32
  }
  func.func @transform_5(%arg0: i32, %arg1: i32) -> (i32, i32) {
    %c0_i32 = arith.constant 0 : i32
    %c0_i32_0 = arith.constant 0 : i32
    return %c0_i32, %arg1 : i32, i32
  }
  func.func @transform_6(%arg0: i32, %arg1: i32) -> (i32, i32) {
    %c0_i32 = arith.constant 0 : i32
    %c0_i32_0 = arith.constant 0 : i32
    return %c0_i32, %arg1 : i32, i32
  }
  func.func @transform_7(%arg0: i32, %arg1: i32) -> (i32, i32) {
    %c0_i32 = arith.constant 0 : i32
    %c0_i32_0 = arith.constant 0 : i32
    return %c0_i32, %arg1 : i32, i32
  }
  func.func @transform_8(%arg0: i32, %arg1: i32) -> (i32, i32, i32) {
    %c0_i32 = arith.constant 0 : i32
    %c0_i32_0 = arith.constant 0 : i32
    return %arg0, %c0_i32, %arg1 : i32, i32, i32
  }
}

</mosaic_0001>

<llo_original>
// kernel: basic_block_forward.2
$region0: #{basic_block_forward.2}
  #allocation0 [shape = 'u32[]', space=smem, size = 0x4, offset = 0x4, fixed_abs, tag = 'smem constant byte address 0x4 - core index']
  #allocation1 [shape = 'u32[144,128]{1,0:T(1,128)}', space=vmem, size = 0x12000, scoped, tag = 'internal scratch']
  %s0 = inlined_call_operand.vmem [shape: bf16[2,82,4], index: 0, kind: input, shape index: {}]
  %s1 = inlined_call_operand.vmem [shape: bf16[2,82,4], index: 1, kind: input, shape index: {}]
  %s2 = inlined_call_operand.vmem [shape: bf16[2,82,4], index: 2, kind: input, shape index: {}]
  %s3 = inlined_call_operand.vmem [shape: bf16[2,82,4], index: 3, kind: input, shape index: {}]
  %s4 = inlined_call_operand.vmem [shape: bf16[36,128], index: 4, kind: input, shape index: {}]
  %s5 = inlined_call_operand.vmem [shape: f32[1,128], index: 5, kind: input, shape index: {}]
  %s6 = inlined_call_operand.vmem [shape: f32[1,128], index: 6, kind: input, shape index: {}]
  %s7 = inlined_call_operand.vmem [shape: bf16[2,72,128], index: 7, kind: output, shape index: {}]
  %s8 = sld [smem:[#allocation0]]
  $region61: #{basic_block_forward.2} parent=0
    _
  %s10 = ssub.s32 1, %s8
  %s11 = scalar_select 0, %s10, %s8
  loop: start=0, step=1, limit=4
  $region2: #{basic_block_forward.2} parent=0 // loop_pre_header
    _
  $region3: #{basic_block_forward.2} parent=0 // loop_header
    %s13 = sphi 0, %s17
    %p14 = scmp.ge.s32.totalorder %s13, 4
    %s20 = sphi 0, %s32
    %s21 = sphi 0, %s28
    %s22 = sphi 0, %s20
    %s23 = sphi 0, %s21
    %s24 = sphi 0, %s22
    %s25 = sphi 0, %s23
    %s35 = sphi 0, %s37
    %s38 = sphi 0, %s35
    %s39 = sphi 0, %s38
    %s55 = sphi 0, %s39
    %s61 = sphi 0, %s63
    %s64 = sphi 0, %s61
    %s65 = sphi 0, %s64
    %s81 = sphi 0, %s65
    %s87 = sphi 0, %s89
    %s90 = sphi 0, %s87
    %s91 = sphi 0, %s90
    %s107 = sphi 0, %s91
    %s113 = sphi 0, %s115
    %s116 = sphi 0, %s113
    %s117 = sphi 0, %s116
    %s133 = sphi 0, %s117
    %s139 = sphi 0, %s141
    %s142 = sphi 0, %s139
    %s143 = sphi 0, %s142
    %s159 = sphi 0, %s143
    %s165 = sphi 0, %s167
    %s168 = sphi 0, %s165
    %s169 = sphi 0, %s168
    %s185 = sphi 0, %s169
    %s191 = sphi 0, %s193
    %s194 = sphi 0, %s191
    %s195 = sphi 0, %s194
    %s211 = sphi 0, %s195
    %s219 = sphi 0, %s221
    %s222 = sphi 0, %s219
    %s223 = sphi 0, %s222
    %s239 = sphi 0, %s223
  $region4: #{basic_block_forward.2} parent=0 // loop_header_branch
    %16 = sbr.rel (%p14) target = $region8
  $region5: #{basic_block_forward.2} parent=0 // loop_body
    %s18 = ssub.s32 %s13, 1
    %s19 = ssub.s32 %s13, 2
    %s26 = sadd.s32 1, %s21
    %p27 = scmp.ge.s32.totalorder %s26, 1
    %s28 = scalar_select %p27, 0, %s26
    %s29 = sadd.s32 1, %s20
    %s30 = scalar_select %p27, %s29, %s20
    %p31 = scmp.ge.s32.totalorder %s30, 2
    %s32 = scalar_select %p31, 0, %s30
    %s33 = ssub.s32 %s20, %s32
    %p34 = scmp.eq.s32.totalorder %s33, 0
    %s36 = sadd.s32 %s35, 1
    %s37 = scalar_select %p34, %s35, %s36
    %p40 = pneg %p34
    %p41 = scmp.eq.s32.totalorder %s13, 1
    %p42 = por %p40, %p41
    %p43 = scmp.ne.s32.totalorder %s35, %s38
    %p44 = scmp.eq.s32.totalorder %s13, 0
    %p45 = por %p43, %p44
    %p46 = scmp.ne.s32.totalorder %s35, %s38
    %p47 = scmp.eq.s32.totalorder %s18, 1
    %p48 = por %p46, %p47
    %p49 = scmp.ne.s32.totalorder %s38, %s39
    %p50 = scmp.eq.s32.totalorder %s18, 0
    %p51 = por %p49, %p50
    %p52 = scmp.ne.s32.totalorder %s38, %s39
    %p53 = scmp.eq.s32.totalorder %s19, 1
    %p54 = por %p52, %p53
    %p56 = scmp.ne.s32.totalorder %s39, %s55
    %p57 = scmp.eq.s32.totalorder %s19, 0
    %p58 = por %p56, %p57
    %s59 = ssub.s32 %s20, %s32
    %p60 = scmp.eq.s32.totalorder %s59, 0
    %s62 = sadd.s32 %s61, 1
    %s63 = scalar_select %p60, %s61, %s62
    %p66 = pneg %p60
    %p67 = scmp.eq.s32.totalorder %s13, 1
    %p68 = por %p66, %p67
    %p69 = scmp.ne.s32.totalorder %s61, %s64
    %p70 = scmp.eq.s32.totalorder %s13, 0
    %p71 = por %p69, %p70
    %p72 = scmp.ne.s32.totalorder %s61, %s64
    %p73 = scmp.eq.s32.totalorder %s18, 1
    %p74 = por %p72, %p73
    %p75 = scmp.ne.s32.totalorder %s64, %s65
    %p76 = scmp.eq.s32.totalorder %s18, 0
    %p77 = por %p75, %p76
    %p78 = scmp.ne.s32.totalorder %s64, %s65
    %p79 = scmp.eq.s32.totalorder %s19, 1
    %p80 = por %p78, %p79
    %p82 = scmp.ne.s32.totalorder %s65, %s81
    %p83 = scmp.eq.s32.totalorder %s19, 0
    %p84 = por %p82, %p83
    %s85 = ssub.s32 %s20, %s32
    %p86 = scmp.eq.s32.totalorder %s85, 0
    %s88 = sadd.s32 %s87, 1
    %s89 = scalar_select %p86, %s87, %s88
    %p92 = pneg %p86
    %p93 = scmp.eq.s32.totalorder %s13, 1
    %p94 = por %p92, %p93
    %p95 = scmp.ne.s32.totalorder %s87, %s90
    %p96 = scmp.eq.s32.totalorder %s13, 0
    %p97 = por %p95, %p96
    %p98 = scmp.ne.s32.totalorder %s87, %s90
    %p99 = scmp.eq.s32.totalorder %s18, 1
    %p100 = por %p98, %p99
    %p101 = scmp.ne.s32.totalorder %s90, %s91
    %p102 = scmp.eq.s32.totalorder %s18, 0
    %p103 = por %p101, %p102
    %p104 = scmp.ne.s32.totalorder %s90, %s91
    %p105 = scmp.eq.s32.totalorder %s19, 1
    %p106 = por %p104, %p105
    %p108 = scmp.ne.s32.totalorder %s91, %s107
    %p109 = scmp.eq.s32.totalorder %s19, 0
    %p110 = por %p108, %p109
    %s111 = ssub.s32 %s20, %s32
    %p112 = scmp.eq.s32.totalorder %s111, 0
    %s114 = sadd.s32 %s113, 1
    %s115 = scalar_select %p112, %s113, %s114
    %p118 = pneg %p112
    %p119 = scmp.eq.s32.totalorder %s13, 1
    %p120 = por %p118, %p119
    %p121 = scmp.ne.s32.totalorder %s113, %s116
    %p122 = scmp.eq.s32.totalorder %s13, 0
    %p123 = por %p121, %p122
    %p124 = scmp.ne.s32.totalorder %s113, %s116
    %p125 = scmp.eq.s32.totalorder %s18, 1
    %p126 = por %p124, %p125
    %p127 = scmp.ne.s32.totalorder %s116, %s117
    %p128 = scmp.eq.s32.totalorder %s18, 0
    %p129 = por %p127, %p128
    %p130 = scmp.ne.s32.totalorder %s116, %s117
    %p131 = scmp.eq.s32.totalorder %s19, 1
    %p132 = por %p130, %p131
    %p134 = scmp.ne.s32.totalorder %s117, %s133
    %p135 = scmp.eq.s32.totalorder %s19, 0
    %p136 = por %p134, %p135
    %s137 = ssub.s32 %s21, %s28
    %p138 = scmp.eq.s32.totalorder %s137, 0
    %s140 = sadd.s32 %s139, 1
    %s141 = scalar_select %p138, %s139, %s140
    %p144 = pneg %p138
    %p145 = scmp.eq.s32.totalorder %s13, 1
    %p146 = por %p144, %p145
    %p147 = scmp.ne.s32.totalorder %s139, %s142
    %p148 = scmp.eq.s32.totalorder %s13, 0
    %p149 = por %p147, %p148
    %p150 = scmp.ne.s32.totalorder %s139, %s142
    %p151 = scmp.eq.s32.totalorder %s18, 1
    %p152 = por %p150, %p151
    %p153 = scmp.ne.s32.totalorder %s142, %s143
    %p154 = scmp.eq.s32.totalorder %s18, 0
    %p155 = por %p153, %p154
    %p156 = scmp.ne.s32.totalorder %s142, %s143
    %p157 = scmp.eq.s32.totalorder %s19, 1
    %p158 = por %p156, %p157
    %p160 = scmp.ne.s32.totalorder %s143, %s159
    %p161 = scmp.eq.s32.totalorder %s19, 0
    %p162 = por %p160, %p161
    %s163 = ssub.s32 %s21, %s28
    %p164 = scmp.eq.s32.totalorder %s163, 0
    %s166 = sadd.s32 %s165, 1
    %s167 = scalar_select %p164, %s165, %s166
    %p170 = pneg %p164
    %p171 = scmp.eq.s32.totalorder %s13, 1
    %p172 = por %p170, %p171
    %p173 = scmp.ne.s32.totalorder %s165, %s168
    %p174 = scmp.eq.s32.totalorder %s13, 0
    %p175 = por %p173, %p174
    %p176 = scmp.ne.s32.totalorder %s165, %s168
    %p177 = scmp.eq.s32.totalorder %s18, 1
    %p178 = por %p176, %p177
    %p179 = scmp.ne.s32.totalorder %s168, %s169
    %p180 = scmp.eq.s32.totalorder %s18, 0
    %p181 = por %p179, %p180
    %p182 = scmp.ne.s32.totalorder %s168, %s169
    %p183 = scmp.eq.s32.totalorder %s19, 1
    %p184 = por %p182, %p183
    %p186 = scmp.ne.s32.totalorder %s169, %s185
    %p187 = scmp.eq.s32.totalorder %s19, 0
    %p188 = por %p186, %p187
    %s189 = ssub.s32 %s21, %s28
    %p190 = scmp.eq.s32.totalorder %s189, 0
    %s192 = sadd.s32 %s191, 1
    %s193 = scalar_select %p190, %s191, %s192
    %p196 = pneg %p190
    %p197 = scmp.eq.s32.totalorder %s13, 1
    %p198 = por %p196, %p197
    %p199 = scmp.ne.s32.totalorder %s191, %s194
    %p200 = scmp.eq.s32.totalorder %s13, 0
    %p201 = por %p199, %p200
    %p202 = scmp.ne.s32.totalorder %s191, %s194
    %p203 = scmp.eq.s32.totalorder %s18, 1
    %p204 = por %p202, %p203
    %p205 = scmp.ne.s32.totalorder %s194, %s195
    %p206 = scmp.eq.s32.totalorder %s18, 0
    %p207 = por %p205, %p206
    %p208 = scmp.ne.s32.totalorder %s194, %s195
    %p209 = scmp.eq.s32.totalorder %s19, 1
    %p210 = por %p208, %p209
    %p212 = scmp.ne.s32.totalorder %s195, %s211
    %p213 = scmp.eq.s32.totalorder %s19, 0
    %p214 = por %p212, %p213
    %s215 = ssub.s32 %s20, %s32
    %s216 = ssub.s32 %s21, %s28
    %s217 = sor.u32 %s215, %s216
    %p218 = scmp.eq.s32.totalorder %s217, 0
    %s220 = sadd.s32 %s219, 1
    %s221 = scalar_select %p218, %s219, %s220
    %p224 = pneg %p218
    %p225 = scmp.eq.s32.totalorder %s13, 1
    %p226 = por %p224, %p225
    %p227 = scmp.ne.s32.totalorder %s219, %s222
    %p228 = scmp.eq.s32.totalorder %s13, 0
    %p229 = por %p227, %p228
    %p230 = scmp.ne.s32.totalorder %s219, %s222
    %p231 = scmp.eq.s32.totalorder %s18, 1
    %p232 = por %p230, %p231
    %p233 = scmp.ne.s32.totalorder %s222, %s223
    %p234 = scmp.eq.s32.totalorder %s18, 0
    %p235 = por %p233, %p234
    %p236 = scmp.ne.s32.totalorder %s222, %s223
    %p237 = scmp.eq.s32.totalorder %s19, 1
    %p238 = por %p236, %p237
    %p240 = scmp.ne.s32.totalorder %s223, %s239
    %p241 = scmp.eq.s32.totalorder %s19, 0
    %p242 = por %p240, %p241
    %p243 = scmp.le.s32.totalorder 1, %s13
    %p244 = scmp.lt.s32.totalorder %s13, 3
    %p245 = pnand %p243, %p244
    %p246 = pneg %p245
    // Predicated region
    $region9: #{basic_block_forward.2} parent=5 // pred_check
      _
    $region10: #{basic_block_forward.2} parent=5 // pred_check_branch
      %248 = sbr.rel (%p245) target = $region12
    $region11: #{basic_block_forward.2} parent=5 // pred_region
      %s249 = ssub.s32 %s13, 1
      // Predicated region
      $region13: #{basic_block_forward.2} parent=11 // pred_check
        %p250 = pneg %p155
      $region14: #{basic_block_forward.2} parent=11 // pred_check_branch
        %252 = sbr.rel (%p250) target = $region16
      $region15: #{basic_block_forward.2} parent=11 // pred_region
        %p253 = scmp.lt.s32.totalorder %s23, 0
        %s254 = scalar_select %p253, %s23, 0
        %s255 = smul.addr %s254, 4
        %s256 = scalar_lea.vmem %s4, %s255
      $region16: #{basic_block_forward.2} parent=11 // pred_fallthru
        _
      // Predicated region
      $region17: #{basic_block_forward.2} parent=11 // pred_check
        %p257 = pneg %p181
      $region18: #{basic_block_forward.2} parent=11 // pred_check_branch
        %259 = sbr.rel (%p257) target = $region20
      $region19: #{basic_block_forward.2} parent=11 // pred_region
        %p260 = scmp.lt.s32.totalorder %s23, 0
        %s261 = scalar_select %p260, %s23, 0
        %s262 = scalar_lea.vmem %s5, %s261
      $region20: #{basic_block_forward.2} parent=11 // pred_fallthru
        _
      // Predicated region
      $region21: #{basic_block_forward.2} parent=11 // pred_check
        %p263 = pneg %p207
      $region22: #{basic_block_forward.2} parent=11 // pred_check_branch
        %265 = sbr.rel (%p263) target = $region24
      $region23: #{basic_block_forward.2} parent=11 // pred_region
        %p266 = scmp.lt.s32.totalorder %s23, 0
        %s267 = scalar_select %p266, %s23, 0
        %s268 = scalar_lea.vmem %s6, %s267
      $region24: #{basic_block_forward.2} parent=11 // pred_fallthru
        _
    $region12: #{basic_block_forward.2} parent=5 // pred_fallthru
      _
    %p269 = scmp.lt.s32.totalorder %s13, 2
    // Predicated region
    $region25: #{basic_block_forward.2} parent=5 // pred_check
      %p270 = pneg %p269
    $region26: #{basic_block_forward.2} parent=5 // pred_check_branch
      %272 = sbr.rel (%p270) target = $region28
    $region27: #{basic_block_forward.2} parent=5 // pred_region
      // Predicated region
      $region29: #{basic_block_forward.2} parent=27 // pred_check
        %p273 = pneg %p45
      $region30: #{basic_block_forward.2} parent=27 // pred_check_branch
        %275 = sbr.rel (%p273) target = $region32
      $region31: #{basic_block_forward.2} parent=27 // pred_region
        %p276 = scmp.lt.s32.totalorder %s20, 1
        %s277 = scalar_select %p276, %s20, 1
        %s278 = smul.addr %s277, 11
        %s279 = smul.addr %s278, 4
        %s280 = scalar_lea.vmem %s0, %s279
      $region32: #{basic_block_forward.2} parent=27 // pred_fallthru
        _
      // Predicated region
      $region33: #{basic_block_forward.2} parent=27 // pred_check
        %p281 = pneg %p71
      $region34: #{basic_block_forward.2} parent=27 // pred_check_branch
        %283 = sbr.rel (%p281) target = $region36
      $region35: #{basic_block_forward.2} parent=27 // pred_region
        %p284 = scmp.lt.s32.totalorder %s20, 1
        %s285 = scalar_select %p284, %s20, 1
        %s286 = smul.addr %s285, 11
        %s287 = smul.addr %s286, 4
        %s288 = scalar_lea.vmem %s1, %s287
      $region36: #{basic_block_forward.2} parent=27 // pred_fallthru
        _
      // Predicated region
      $region37: #{basic_block_forward.2} parent=27 // pred_check
        %p289 = pneg %p97
      $region38: #{basic_block_forward.2} parent=27 // pred_check_branch
        %291 = sbr.rel (%p289) target = $region40
      $region39: #{basic_block_forward.2} parent=27 // pred_region
        %p292 = scmp.lt.s32.totalorder %s20, 1
        %s293 = scalar_select %p292, %s20, 1
        %s294 = smul.addr %s293, 11
        %s295 = smul.addr %s294, 4
        %s296 = scalar_lea.vmem %s2, %s295
      $region40: #{basic_block_forward.2} parent=27 // pred_fallthru
        _
      // Predicated region
      $region41: #{basic_block_forward.2} parent=27 // pred_check
        %p297 = pneg %p123
      $region42: #{basic_block_forward.2} parent=27 // pred_check_branch
        %299 = sbr.rel (%p297) target = $region44
      $region43: #{basic_block_forward.2} parent=27 // pred_region
        %p300 = scmp.lt.s32.totalorder %s20, 1
        %s301 = scalar_select %p300, %s20, 1
        %s302 = smul.addr %s301, 11
        %s303 = smul.addr %s302, 4
        %s304 = scalar_lea.vmem %s3, %s303
      $region44: #{basic_block_forward.2} parent=27 // pred_fallthru
        _
    $region28: #{basic_block_forward.2} parent=5 // pred_fallthru
      _
    %p305 = scmp.le.s32.totalorder 1, %s13
    %p306 = scmp.lt.s32.totalorder %s13, 3
    %p307 = pnand %p305, %p306
    %p308 = pneg %p307
    // Predicated region
    $region45: #{basic_block_forward.2} parent=5 // pred_check
      _
    $region46: #{basic_block_forward.2} parent=5 // pred_check_branch
      %310 = sbr.rel (%p307) target = $region48
    $region47: #{basic_block_forward.2} parent=5 // pred_region
      %s311 = ssub.s32 %s13, 1
      %p312 = scmp.lt.s32.totalorder %s22, 1
      %s313 = scalar_select %p312, %s22, 1
      %s314 = smul.addr %s313, 11
      %s315 = smul.addr %s314, 4
      %s316 = scalar_lea.vmem %s0, %s315
      %p317 = pneg %p51
      %p318 = pneg %p48
      %p319 = scmp.lt.s32.totalorder %s22, 1
      %s320 = scalar_select %p319, %s22, 1
      %s321 = smul.addr %s320, 11
      %s322 = smul.addr %s321, 4
      %s323 = scalar_lea.vmem %s1, %s322
      %p324 = pneg %p77
      %p325 = pneg %p74
      %p326 = scmp.lt.s32.totalorder %s22, 1
      %s327 = scalar_select %p326, %s22, 1
      %s328 = smul.addr %s327, 11
      %s329 = smul.addr %s328, 4
      %s330 = scalar_lea.vmem %s2, %s329
      %p331 = pneg %p103
      %p332 = pneg %p100
      %p333 = scmp.lt.s32.totalorder %s22, 1
      %s334 = scalar_select %p333, %s22, 1
      %s335 = smul.addr %s334, 11
      %s336 = smul.addr %s335, 4
      %s337 = scalar_lea.vmem %s3, %s336
      %p338 = pneg %p129
      %p339 = pneg %p126
      %p340 = scmp.lt.s32.totalorder %s23, 0
      %s341 = scalar_select %p340, %s23, 0
      %s342 = smul.addr %s341, 4
      %s343 = scalar_lea.vmem %s4, %s342
      %p344 = pneg %p155
      %p345 = pneg %p152
      %p346 = scmp.lt.s32.totalorder %s23, 0
      %s347 = scalar_select %p346, %s23, 0
      %s348 = scalar_lea.vmem %s5, %s347
      %p349 = pneg %p181
      %p350 = pneg %p178
      %p351 = scmp.lt.s32.totalorder %s23, 0
      %s352 = scalar_select %p351, %s23, 0
      %s353 = scalar_lea.vmem %s6, %s352
      %p354 = pneg %p207
      %p355 = pneg %p204
      %p356 = pneg %p235
      %p357 = pneg %p232
      %p358 = scmp.lt.s32.totalorder %s22, 1
      %s359 = scalar_select %p358, %s22, 1
      %p360 = scmp.lt.s32.totalorder %s23, 0
      %s361 = scalar_select %p360, %s23, 0
      %s362 = smul.addr %s359, 9
      %s363 = sadd.s32 %s361, %s362
      %s364 = smul.addr %s363, 4
      %s365 = scalar_lea.vmem %s7, %s364
      %p366 = scmp.lt.s32.totalorder %s22, 1
      %s367 = scalar_select %p366, %s22, 1
      %s368 = smul.addr %s367, 11
      %s369 = smul.addr %s368, 4
      %s370 = scalar_lea.vmem %s0, %s369
      %p371 = scmp.lt.s32.totalorder %s22, 1
      %s372 = scalar_select %p371, %s22, 1
      %s373 = smul.addr %s372, 11
      %s374 = smul.addr %s373, 4
      %s375 = scalar_lea.vmem %s1, %s374
      %p376 = scmp.lt.s32.totalorder %s22, 1
      %s377 = scalar_select %p376, %s22, 1
      %s378 = smul.addr %s377, 11
      %s379 = smul.addr %s378, 4
      %s380 = scalar_lea.vmem %s2, %s379
      %p381 = scmp.lt.s32.totalorder %s22, 1
      %s382 = scalar_select %p381, %s22, 1
      %s383 = smul.addr %s382, 11
      %s384 = smul.addr %s383, 4
      %s385 = scalar_lea.vmem %s3, %s384
      %p386 = scmp.lt.s32.totalorder %s23, 0
      %s387 = scalar_select %p386, %s23, 0
      %s388 = smul.addr %s387, 4
      %s389 = scalar_lea.vmem %s4, %s388
      %p390 = scmp.lt.s32.totalorder %s23, 0
      %s391 = scalar_select %p390, %s23, 0
      %s392 = scalar_lea.vmem %s5, %s391
      %p393 = scmp.lt.s32.totalorder %s23, 0
      %s394 = scalar_select %p393, %s23, 0
      %s395 = scalar_lea.vmem %s6, %s394
      %p396 = scmp.lt.s32.totalorder %s22, 1
      %s397 = scalar_select %p396, %s22, 1
      %p398 = scmp.lt.s32.totalorder %s23, 0
      %s399 = scalar_select %p398, %s23, 0
      %s400 = smul.addr %s397, 9
      %s401 = sadd.s32 %s399, %s400
      %s402 = smul.addr %s401, 4
      %s403 = scalar_lea.vmem %s7, %s402
      %v405 = vld [vmem:[%s370] sm:$0xf]
      %v406 = vld [vmem:[%s370 + $0x4] sm:$0xf]
      %v407 = vld [vmem:[%s370 + $0x8] sm:$0xf]
      %v408 = vld [vmem:[%s370 + $0xc] sm:$0xf]
      %v409 = vld [vmem:[%s370 + $0x10] sm:$0xf]
      %v410 = vld [vmem:[%s370 + $0x14] sm:$0xf]
      %v411 = vld [vmem:[%s370 + $0x18] sm:$0xf]
      %v412 = vld [vmem:[%s370 + $0x1c] sm:$0xf]
      %v413 = vld [vmem:[%s370 + $0x20] sm:$0xf]
      %v414 = vld [vmem:[%s370 + $0x24] sm:$0xf]
      %v415 = vld [vmem:[%s370 + $0x28] sm:$0x1]
      %v416 = vld [vmem:[%s375] sm:$0xf]
      %v417 = vld [vmem:[%s375 + $0x4] sm:$0xf]
      %v418 = vld [vmem:[%s375 + $0x8] sm:$0xf]
      %v419 = vld [vmem:[%s375 + $0xc] sm:$0xf]
      %v420 = vld [vmem:[%s375 + $0x10] sm:$0xf]
      %v421 = vld [vmem:[%s375 + $0x14] sm:$0xf]
      %v422 = vld [vmem:[%s375 + $0x18] sm:$0xf]
      %v423 = vld [vmem:[%s375 + $0x1c] sm:$0xf]
      %v424 = vld [vmem:[%s375 + $0x20] sm:$0xf]
      %v425 = vld [vmem:[%s375 + $0x24] sm:$0xf]
      %v426 = vld [vmem:[%s375 + $0x28] sm:$0x1]
      %v427 = vld [vmem:[%s380] sm:$0xf]
      %v428 = vld [vmem:[%s380 + $0x4] sm:$0xf]
      %v429 = vld [vmem:[%s380 + $0x8] sm:$0xf]
      %v430 = vld [vmem:[%s380 + $0xc] sm:$0xf]
      %v431 = vld [vmem:[%s380 + $0x10] sm:$0xf]
      %v432 = vld [vmem:[%s380 + $0x14] sm:$0xf]
      %v433 = vld [vmem:[%s380 + $0x18] sm:$0xf]
      %v434 = vld [vmem:[%s380 + $0x1c] sm:$0xf]
      %v435 = vld [vmem:[%s380 + $0x20] sm:$0xf]
      %v436 = vld [vmem:[%s380 + $0x24] sm:$0xf]
      %v437 = vld [vmem:[%s385] sm:$0xf]
      %v438 = vld [vmem:[%s385 + $0x4] sm:$0xf]
      %v439 = vld [vmem:[%s385 + $0x8] sm:$0xf]
      %v440 = vld [vmem:[%s385 + $0xc] sm:$0xf]
      %v441 = vld [vmem:[%s385 + $0x10] sm:$0xf]
      %v442 = vld [vmem:[%s385 + $0x14] sm:$0xf]
      %v443 = vld [vmem:[%s385 + $0x18] sm:$0xf]
      %v444 = vld [vmem:[%s385 + $0x1c] sm:$0xf]
      %v445 = vld [vmem:[%s385 + $0x20] sm:$0xf]
      %v446 = vld [vmem:[%s392] sm:$0x1]
      %v447 = vld [vmem:[%s395] sm:$0x1]
      %v457 = vunpack.c.l.b16 %v405
      %v458 = vunpack.c.l.b16 %v406
      %v459 = vunpack.c.l.b16 %v407
      %v460 = vunpack.c.l.b16 %v408
      %v461 = vunpack.c.l.b16 %v409
      %v462 = vunpack.c.l.b16 %v410
      %v463 = vunpack.c.l.b16 %v411
      %v464 = vunpack.c.l.b16 %v412
      %v465 = vunpack.c.l.b16 %v413
      %v466 = vpack.c.b16 %v458, %v457
      %v467 = vpack.c.b16 %v460, %v459
      %v468 = vpack.c.b16 %v462, %v461
      %v469 = vpack.c.b16 %v464, %v463
      %v470 = vpack.c.b16 %v465, %v465
      %v480 = vunpack.c.l.b16 %v416
      %v481 = vunpack.c.l.b16 %v417
      %v482 = vunpack.c.l.b16 %v418
      %v483 = vunpack.c.l.b16 %v419
      %v484 = vunpack.c.l.b16 %v420
      %v485 = vunpack.c.l.b16 %v421
      %v486 = vunpack.c.l.b16 %v422
      %v487 = vunpack.c.l.b16 %v423
      %v488 = vunpack.c.l.b16 %v424
      %v489 = vpack.c.b16 %v481, %v480
      %v490 = vpack.c.b16 %v483, %v482
      %v491 = vpack.c.b16 %v485, %v484
      %v492 = vpack.c.b16 %v487, %v486
      %v493 = vpack.c.b16 %v488, %v488
      %494 = vrot.lane.b32.xlu0 %v489, 4
      %v495 = vpop.permute.xlu0 %494
      %496 = vrot.lane.b32.xlu0 %v490, 4
      %v497 = vpop.permute.xlu0 %496
      %498 = vrot.lane.b32.xlu0 %v491, 4
      %v499 = vpop.permute.xlu0 %498
      %500 = vrot.lane.b32.xlu0 %v492, 4
      %v501 = vpop.permute.xlu0 %500
      %502 = vrot.lane.b32.xlu0 %v493, 4
      %v503 = vpop.permute.xlu0 %502
      %v505 = vunpack.c.l.b16 %v414
      %v506 = vpack.c.b16 %v505, %v465
      %vm507 = vsmask.f32 7424
      %v509 = vshrl.u32 %v466, 16
      %v511 = vshll.u32 %v466, 16
      %v513 = vrot.slane %v511, 1
      %v514 = vor.u32 %v509, %v513
      %v516 = vshll.u32 %v467, 16
      %v518 = vrot.slane %v516, 1
      %v519 = vsel %vm507, %v514, %v518
      %v520 = vshrl.u32 %v467, 16
      %v522 = vor.u32 %v520, %v518
      %v524 = vshll.u32 %v468, 16
      %v526 = vrot.slane %v524, 1
      %v527 = vsel %vm507, %v522, %v526
      %v528 = vshrl.u32 %v468, 16
      %v530 = vor.u32 %v528, %v526
      %v532 = vshll.u32 %v469, 16
      %v534 = vrot.slane %v532, 1
      %v535 = vsel %vm507, %v530, %v534
      %v536 = vshrl.u32 %v469, 16
      %v538 = vor.u32 %v536, %v534
      %v540 = vshll.u32 %v506, 16
      %v542 = vrot.slane %v540, 1
      %v543 = vsel %vm507, %v538, %v542
      %v544 = vshrl.u32 %v506, 16
      %v546 = vor.u32 %v544, %v542
      %547 = vrot.lane.b32.xlu0 %v519, 8
      %v548 = vpop.permute.xlu0 %547
      %549 = vrot.lane.b32.xlu0 %v527, 8
      %v550 = vpop.permute.xlu0 %549
      %551 = vrot.lane.b32.xlu0 %v535, 8
      %v552 = vpop.permute.xlu0 %551
      %553 = vrot.lane.b32.xlu0 %v543, 8
      %v554 = vpop.permute.xlu0 %553
      %555 = vrot.lane.b32.xlu0 %v546, 8
      %v556 = vpop.permute.xlu0 %555
      %v566 = vunpack.c.l.b16 %v427
      %v567 = vunpack.c.l.b16 %v428
      %v568 = vunpack.c.l.b16 %v429
      %v569 = vunpack.c.l.b16 %v430
      %v570 = vunpack.c.l.b16 %v431
      %v571 = vunpack.c.l.b16 %v432
      %v572 = vunpack.c.l.b16 %v433
      %v573 = vunpack.c.l.b16 %v434
      %v574 = vunpack.c.l.b16 %v435
      %v575 = vpack.c.b16 %v567, %v566
      %v576 = vpack.c.b16 %v569, %v568
      %v577 = vpack.c.b16 %v571, %v570
      %v578 = vpack.c.b16 %v573, %v572
      %v579 = vpack.c.b16 %v574, %v574
      %580 = vrot.lane.b32.xlu0 %v575, 12
      %v581 = vpop.permute.xlu0 %580
      %582 = vrot.lane.b32.xlu0 %v576, 12
      %v583 = vpop.permute.xlu0 %582
      %584 = vrot.lane.b32.xlu0 %v577, 12
      %v585 = vpop.permute.xlu0 %584
      %586 = vrot.lane.b32.xlu0 %v578, 12
      %v587 = vpop.permute.xlu0 %586
      %588 = vrot.lane.b32.xlu0 %v579, 12
      %v589 = vpop.permute.xlu0 %588
      %v599 = vunpack.c.l.b16 %v437
      %v600 = vunpack.c.l.b16 %v438
      %v601 = vunpack.c.l.b16 %v439
      %v602 = vunpack.c.l.b16 %v440
      %v603 = vunpack.c.l.b16 %v441
      %v604 = vunpack.c.l.b16 %v442
      %v605 = vunpack.c.l.b16 %v443
      %v606 = vunpack.c.l.b16 %v444
      %v607 = vunpack.c.l.b16 %v445
      %v608 = vpack.c.b16 %v600, %v599
      %v609 = vpack.c.b16 %v602, %v601
      %v610 = vpack.c.b16 %v604, %v603
      %v611 = vpack.c.b16 %v606, %v605
      %v612 = vpack.c.b16 %v607, %v607
      %613 = vrot.lane.b32.xlu0 %v608, 16
      %v614 = vpop.permute.xlu0 %613
      %615 = vrot.lane.b32.xlu0 %v609, 16
      %v616 = vpop.permute.xlu0 %615
      %617 = vrot.lane.b32.xlu0 %v610, 16
      %v618 = vpop.permute.xlu0 %617
      %619 = vrot.lane.b32.xlu0 %v611, 16
      %v620 = vpop.permute.xlu0 %619
      %621 = vrot.lane.b32.xlu0 %v612, 16
      %v622 = vpop.permute.xlu0 %621
      %v624 = vunpack.c.l.b16 %v436
      %v625 = vpack.c.b16 %v624, %v574
      %v627 = vshrl.u32 %v575, 16
      %v629 = vshll.u32 %v575, 16
      %v631 = vrot.slane %v629, 1
      %v632 = vor.u32 %v627, %v631
      %v634 = vshll.u32 %v576, 16
      %v636 = vrot.slane %v634, 1
      %v637 = vsel %vm507, %v632, %v636
      %v638 = vshrl.u32 %v576, 16
      %v640 = vor.u32 %v638, %v636
      %v642 = vshll.u32 %v577, 16
      %v644 = vrot.slane %v642, 1
      %v645 = vsel %vm507, %v640, %v644
      %v646 = vshrl.u32 %v577, 16
      %v648 = vor.u32 %v646, %v644
      %v650 = vshll.u32 %v578, 16
      %v652 = vrot.slane %v650, 1
      %v653 = vsel %vm507, %v648, %v652
      %v654 = vshrl.u32 %v578, 16
      %v656 = vor.u32 %v654, %v652
      %v658 = vshll.u32 %v625, 16
      %v660 = vrot.slane %v658, 1
      %v661 = vsel %vm507, %v656, %v660
      %v662 = vshrl.u32 %v625, 16
      %v664 = vor.u32 %v662, %v660
      %665 = vrot.lane.b32.xlu0 %v637, 20
      %v666 = vpop.permute.xlu0 %665
      %667 = vrot.lane.b32.xlu0 %v645, 20
      %v668 = vpop.permute.xlu0 %667
      %669 = vrot.lane.b32.xlu0 %v653, 20
      %v670 = vpop.permute.xlu0 %669
      %671 = vrot.lane.b32.xlu0 %v661, 20
      %v672 = vpop.permute.xlu0 %671
      %673 = vrot.lane.b32.xlu0 %v664, 20
      %v674 = vpop.permute.xlu0 %673
      %v676 = vunpack.c.l.b16 %v415
      %v677 = vpack.c.b16 %v459, %v458
      %v678 = vpack.c.b16 %v461, %v460
      %v679 = vpack.c.b16 %v463, %v462
      %v680 = vpack.c.b16 %v465, %v464
      %v681 = vpack.c.b16 %v676, %v505
      %v683 = vshrl.u32 %v677, 16
      %v685 = vshll.u32 %v677, 16
      %v687 = vrot.slane %v685, 1
      %v688 = vor.u32 %v683, %v687
      %v690 = vshll.u32 %v678, 16
      %v692 = vrot.slane %v690, 1
      %v693 = vsel %vm507, %v688, %v692
      %v694 = vshrl.u32 %v678, 16
      %v696 = vor.u32 %v694, %v692
      %v698 = vshll.u32 %v679, 16
      %v700 = vrot.slane %v698, 1
      %v701 = vsel %vm507, %v696, %v700
      %v702 = vshrl.u32 %v679, 16
      %v704 = vor.u32 %v702, %v700
      %v706 = vshll.u32 %v680, 16
      %v708 = vrot.slane %v706, 1
      %v709 = vsel %vm507, %v704, %v708
      %v710 = vshrl.u32 %v680, 16
      %v712 = vor.u32 %v710, %v708
      %v714 = vshll.u32 %v681, 16
      %v716 = vrot.slane %v714, 1
      %v717 = vsel %vm507, %v712, %v716
      %v718 = vshrl.u32 %v681, 16
      %v720 = vor.u32 %v718, %v716
      %721 = vrot.lane.b32.xlu0 %v693, 24
      %v722 = vpop.permute.xlu0 %721
      %723 = vrot.lane.b32.xlu0 %v701, 24
      %v724 = vpop.permute.xlu0 %723
      %725 = vrot.lane.b32.xlu0 %v709, 24
      %v726 = vpop.permute.xlu0 %725
      %727 = vrot.lane.b32.xlu0 %v717, 24
      %v728 = vpop.permute.xlu0 %727
      %729 = vrot.lane.b32.xlu0 %v720, 24
      %v730 = vpop.permute.xlu0 %729
      %v733 = vunpack.c.l.b16 %v425
      %v734 = vunpack.c.l.b16 %v426
      %v735 = vpack.c.b16 %v482, %v481
      %v736 = vpack.c.b16 %v484, %v483
      %v737 = vpack.c.b16 %v486, %v485
      %v738 = vpack.c.b16 %v488, %v487
      %v739 = vpack.c.b16 %v734, %v733
      %v741 = vshrl.u32 %v735, 16
      %v743 = vshll.u32 %v735, 16
      %v745 = vrot.slane %v743, 1
      %v746 = vor.u32 %v741, %v745
      %v748 = vshll.u32 %v736, 16
      %v750 = vrot.slane %v748, 1
      %v751 = vsel %vm507, %v746, %v750
      %v752 = vshrl.u32 %v736, 16
      %v754 = vor.u32 %v752, %v750
      %v756 = vshll.u32 %v737, 16
      %v758 = vrot.slane %v756, 1
      %v759 = vsel %vm507, %v754, %v758
      %v760 = vshrl.u32 %v737, 16
      %v762 = vor.u32 %v760, %v758
      %v764 = vshll.u32 %v738, 16
      %v766 = vrot.slane %v764, 1
      %v767 = vsel %vm507, %v762, %v766
      %v768 = vshrl.u32 %v738, 16
      %v770 = vor.u32 %v768, %v766
      %v772 = vshll.u32 %v739, 16
      %v774 = vrot.slane %v772, 1
      %v775 = vsel %vm507, %v770, %v774
      %v776 = vshrl.u32 %v739, 16
      %v778 = vor.u32 %v776, %v774
      %779 = vrot.lane.b32.xlu0 %v751, 28
      %v780 = vpop.permute.xlu0 %779
      %781 = vrot.lane.b32.xlu0 %v759, 28
      %v782 = vpop.permute.xlu0 %781
      %783 = vrot.lane.b32.xlu0 %v767, 28
      %v784 = vpop.permute.xlu0 %783
      %785 = vrot.lane.b32.xlu0 %v775, 28
      %v786 = vpop.permute.xlu0 %785
      %787 = vrot.lane.b32.xlu0 %v778, 28
      %v788 = vpop.permute.xlu0 %787
      %vm789 = vcmask 1046528
      %v790 = vrot.slane %v677, 1
      %v791 = vrot.slane %v678, 1
      %v792 = vsel %vm789, %v790, %v791
      %v793 = vrot.slane %v679, 1
      %v794 = vsel %vm789, %v791, %v793
      %v795 = vrot.slane %v680, 1
      %v796 = vsel %vm789, %v793, %v795
      %v797 = vrot.slane %v681, 1
      %v798 = vsel %vm789, %v795, %v797
      %799 = vrot.lane.b32.xlu0 %v792, 32
      %v800 = vpop.permute.xlu0 %799
      %801 = vrot.lane.b32.xlu0 %v794, 32
      %v802 = vpop.permute.xlu0 %801
      %803 = vrot.lane.b32.xlu0 %v796, 32
      %v804 = vpop.permute.xlu0 %803
      %805 = vrot.lane.b32.xlu0 %v798, 32
      %v806 = vpop.permute.xlu0 %805
      %807 = vrot.lane.b32.xlu0 %v797, 32
      %v808 = vpop.permute.xlu0 %807
      %vm809 = vcmask 31744
      %v811 = vsel %vm809, %v466, %v495
      %v813 = vsel %vm809, %v467, %v497
      %v815 = vsel %vm809, %v468, %v499
      %v817 = vsel %vm809, %v469, %v501
      %v820 = vsel %vm809, %v470, %v503
      %vm821 = vcmask 64512
      %v823 = vsel %vm821, %v811, %v548
      %v825 = vsel %vm821, %v813, %v550
      %v827 = vsel %vm821, %v815, %v552
      %v829 = vsel %vm821, %v817, %v554
      %v831 = vsel %vm821, %v820, %v556
      %vm832 = vcmask 97280
      %v834 = vsel %vm832, %v823, %v581
      %v836 = vsel %vm832, %v825, %v583
      %v838 = vsel %vm832, %v827, %v585
      %v840 = vsel %vm832, %v829, %v587
      %v842 = vsel %vm832, %v831, %v589
      %vm843 = vcmask 130048
      %v845 = vsel %vm843, %v834, %v614
      %v847 = vsel %vm843, %v836, %v616
      %v849 = vsel %vm843, %v838, %v618
      %v851 = vsel %vm843, %v840, %v620
      %v853 = vsel %vm843, %v842, %v622
      %vm854 = vcmask 162816
      %v856 = vsel %vm854, %v845, %v666
      %v858 = vsel %vm854, %v847, %v668
      %v860 = vsel %vm854, %v849, %v670
      %v862 = vsel %vm854, %v851, %v672
      %v864 = vsel %vm854, %v853, %v674
      %vm865 = vcmask 195584
      %v867 = vsel %vm865, %v856, %v722
      %v869 = vsel %vm865, %v858, %v724
      %v871 = vsel %vm865, %v860, %v726
      %v873 = vsel %vm865, %v862, %v728
      %v875 = vsel %vm865, %v864, %v730
      %vm876 = vcmask 228352
      %v878 = vsel %vm876, %v867, %v780
      %v880 = vsel %vm876, %v869, %v782
      %v882 = vsel %vm876, %v871, %v784
      %v884 = vsel %vm876, %v873, %v786
      %v886 = vsel %vm876, %v875, %v788
      %vm887 = vcmask 261120
      %v889 = vsel %vm887, %v878, %v800
      %v891 = vsel %vm887, %v880, %v802
      %v893 = vsel %vm887, %v882, %v804
      %v895 = vsel %vm887, %v884, %v806
      %v897 = vsel %vm887, %v886, %v808
      %v898 = vld [vmem:[%s389] sm:$0xf]
      %v899 = vld [vmem:[%s389 + $0x4] sm:$0xf]
      %v900 = vld [vmem:[%s389 + $0x8] sm:$0xf]
      %v901 = vld [vmem:[%s389 + $0xc] sm:$0xf]
      %v902 = vld [vmem:[%s389 + $0x10] sm:$0x3]
      %v908 = vunpack.c.l.b16 %v898
      %v909 = vunpack.c.l.b16 %v899
      %v910 = vunpack.c.l.b16 %v900
      %v911 = vunpack.c.l.b16 %v901
      %v912 = vunpack.c.l.b16 %v902
      %v913 = vpack.c.b16 %v909, %v908
      %v914 = vpack.c.b16 %v911, %v910
      %v915 = vpack.c.b16 %v912, %v912
      %vm918 = vcmask 293888
      %v919 = vsel %vm918, %v889, 0
      %v921 = vsel %vm918, %v891, 0
      %v923 = vsel %vm918, %v893, 0
      %v925 = vsel %vm918, %v895, 0
      %v927 = vsel %vm918, %v897, 0
      %vm929 = vcmask 1041408
      %v931 = vsel %vm929, %v915, 0
      %933 = vmatprep.subr.bf16.mxu0 0
      %934 = vmatpush1.bf16.msra.mxu0 0
      %935 = vmatprep.subr.bf16.mxu0 0
      %936 = vmatpush1.bf16.msra.mxu0 0
      %937 = vmatprep.subr.bf16.mxu0 0
      %938 = vmatpush1.bf16.msra.mxu0 0
      %939 = vmatprep.subr.bf16.mxu0 0
      %940 = vmatpush1.bf16.msra.mxu0 0
      %941 = vmatprep.subr.bf16.mxu0 0
      %942 = vmatpush1.bf16.msra.mxu0 0
      %943 = vmatprep.subr.bf16.mxu0 0
      %944 = vmatpush1.bf16.msra.mxu0 %v931
      %945 = vmatprep.subr.bf16.mxu0 0
      %946 = vmatpush1.bf16.msra.mxu0 %v914
      %947 = vmatprep.subr.bf16.mxu0 0
      %948 = vmatpush1.bf16.msra.mxu0 %v913
      %949 = vmatprep.subr.bf16.mxu0 0
      %950 = vmatpush2.bf16.msra.mxu0 0
      %951 = vmatprep.subr.bf16.mxu0 0
      %952 = vmatpush2.bf16.msra.mxu0 0
      %953 = vmatprep.subr.bf16.mxu0 0
      %954 = vmatpush2.bf16.msra.mxu0 0
      %955 = vmatprep.subr.bf16.mxu0 0
      %956 = vmatpush2.bf16.msra.mxu0 0
      %957 = vmatprep.subr.bf16.mxu0 0
      %958 = vmatpush2.bf16.msra.mxu0 0
      %959 = vmatprep.subr.bf16.mxu0 0
      %960 = vmatpush2.bf16.msra.mxu0 0
      %961 = vmatprep.subr.bf16.mxu0 0
      %962 = vmatpush2.bf16.msra.mxu0 0
      %963 = vmatprep.subr.bf16.mxu0 0
      %964 = vmatpush2.bf16.msra.mxu0 0
      %965 = vmatprep.mubr.bf16.mxu0 0
      %966 = vmatmul.mubr.bf16.gmra.mxu0 %v919
      %v967 = vpop.f32.mrf.mxu0
      %v968 = vadd.f32 0.0, %v967
      %v969 = vpop.f32.mrf.mxu0
      %v970 = vpop.f32.mrf.mxu0
      %v971 = vadd.f32 0.0, %v970
      %v972 = vpop.f32.mrf.mxu0
      %973 = vmatprep.mubr.bf16.mxu0 0
      %974 = vmatmul.mubr.bf16.gmra.mxu0 %v921
      %v975 = vpop.f32.mrf.mxu0
      %v976 = vadd.f32 0.0, %v975
      %v977 = vpop.f32.mrf.mxu0
      %v978 = vpop.f32.mrf.mxu0
      %v979 = vadd.f32 0.0, %v978
      %v980 = vpop.f32.mrf.mxu0
      %981 = vmatprep.mubr.bf16.mxu0 0
      %982 = vmatmul.mubr.bf16.gmra.mxu0 %v923
      %v983 = vpop.f32.mrf.mxu0
      %v984 = vadd.f32 0.0, %v983
      %v985 = vpop.f32.mrf.mxu0
      %v986 = vpop.f32.mrf.mxu0
      %v987 = vadd.f32 0.0, %v986
      %v988 = vpop.f32.mrf.mxu0
      %989 = vmatprep.mubr.bf16.mxu0 0
      %990 = vmatmul.mubr.bf16.gmra.mxu0 %v925
      %v991 = vpop.f32.mrf.mxu0
      %v992 = vadd.f32 0.0, %v991
      %v993 = vpop.f32.mrf.mxu0
      %v994 = vpop.f32.mrf.mxu0
      %v995 = vadd.f32 0.0, %v994
      %v996 = vpop.f32.mrf.mxu0
      %997 = vmatprep.mubr.bf16.mxu0 0
      %998 = vmatmul.mubr.bf16.gmra.mxu0 %v927
      %v999 = vpop.f32.mrf.mxu0
      %v1000 = vadd.f32 0.0, %v999
      %v1001 = vpop.f32.mrf.mxu0
      %v1002 = vpop.f32.mrf.mxu0
      %v1003 = vpop.f32.mrf.mxu0
      %1004 = vdwg.mxu0
      %v1006 = vlaneseq
      %v1007 = vshrl.u32 %v1006, 7
      %v1008 = vsub.s32 0, %v1007
      %v1009 = vrot.slane %v446, %v1008
      %v1011 = vmul.f32 %v968, %v1009
      %v1012 = vmul.f32 %v971, %v1009
      %v1013 = vmul.f32 %v976, %v1009
      %v1014 = vmul.f32 %v979, %v1009
      %v1015 = vmul.f32 %v984, %v1009
      %v1016 = vmul.f32 %v987, %v1009
      %v1017 = vmul.f32 %v992, %v1009
      %v1018 = vmul.f32 %v995, %v1009
      %v1019 = vmul.f32 %v1000, %v1009
      %v1021 = vlaneseq
      %v1022 = vshrl.u32 %v1021, 7
      %v1023 = vsub.s32 0, %v1022
      %v1024 = vrot.slane %v447, %v1023
      %v1026 = vadd.f32 %v1011, %v1024
      %v1027 = vadd.f32 %v1012, %v1024
      %v1028 = vadd.f32 %v1013, %v1024
      %v1029 = vadd.f32 %v1014, %v1024
      %v1030 = vadd.f32 %v1015, %v1024
      %v1031 = vadd.f32 %v1016, %v1024
      %v1032 = vadd.f32 %v1017, %v1024
      %v1033 = vadd.f32 %v1018, %v1024
      %v1034 = vadd.f32 %v1019, %v1024
      %v1035 = vmax.f32 %v1026, 0.0
      %v1036 = vmax.f32 %v1027, 0.0
      %v1037 = vmax.f32 %v1028, 0.0
      %v1038 = vmax.f32 %v1029, 0.0
      %v1039 = vmax.f32 %v1030, 0.0
      %v1040 = vmax.f32 %v1031, 0.0
      %v1041 = vmax.f32 %v1032, 0.0
      %v1042 = vmax.f32 %v1033, 0.0
      %v1043 = vmax.f32 %v1034, 0.0
      %v1044 = vpack.c.bf16 %v1036, %v1035
      %v1045 = vpack.c.bf16 %v1038, %v1037
      %v1046 = vpack.c.bf16 %v1040, %v1039
      %v1047 = vpack.c.bf16 %v1042, %v1041
      %v1048 = vpack.c.bf16 %v1043, %v1043
      %v1054 = vunpack.c.l.b16 %v1044
      %v1055 = vunpack.c.h.b16 %v1044
      %v1056 = vunpack.c.l.b16 %v1045
      %v1057 = vunpack.c.h.b16 %v1045
      %v1058 = vunpack.c.l.b16 %v1046
      %v1059 = vunpack.c.h.b16 %v1046
      %v1060 = vunpack.c.l.b16 %v1047
      %v1061 = vunpack.c.h.b16 %v1047
      %v1062 = vunpack.c.l.b16 %v1048
      %v1063 = vpack.c.b16 %v1054, %v1054
      %v1064 = vpack.c.b16 %v1055, %v1055
      %v1065 = vpack.c.b16 %v1056, %v1056
      %v1066 = vpack.c.b16 %v1057, %v1057
      %v1067 = vpack.c.b16 %v1058, %v1058
      %v1068 = vpack.c.b16 %v1059, %v1059
      %v1069 = vpack.c.b16 %v1060, %v1060
      %v1070 = vpack.c.b16 %v1061, %v1061
      %v1071 = vpack.c.b16 %v1062, %v1062
      %1081 = vst [vmem:[%s403] sm:$0xf] %v1063
      %1082 = vst [vmem:[%s403 + $0x4] sm:$0xf] %v1064
      %1083 = vst [vmem:[%s403 + $0x8] sm:$0xf] %v1065
      %1084 = vst [vmem:[%s403 + $0xc] sm:$0xf] %v1066
      %1085 = vst [vmem:[%s403 + $0x10] sm:$0xf] %v1067
      %1086 = vst [vmem:[%s403 + $0x14] sm:$0xf] %v1068
      %1087 = vst [vmem:[%s403 + $0x18] sm:$0xf] %v1069
      %1088 = vst [vmem:[%s403 + $0x1c] sm:$0xf] %v1070
      %1089 = vst [vmem:[%s403 + $0x20] sm:$0xf] %v1071
      %p1090 = scmp.lt.s32.totalorder %s22, 1
      %s1091 = scalar_select %p1090, %s22, 1
      %p1092 = scmp.lt.s32.totalorder %s23, 0
      %s1093 = scalar_select %p1092, %s23, 0
      %s1094 = smul.addr %s1091, 9
      %s1095 = sadd.s32 %s1093, %s1094
      %s1096 = smul.addr %s1095, 4
      %s1097 = scalar_lea.vmem %s7, %s1096
      // Predicated region
      $region49: #{basic_block_forward.2} parent=47 // pred_check
        %p1098 = pneg %p232
      $region50: #{basic_block_forward.2} parent=47 // pred_check_branch
        %1100 = sbr.rel (%p1098) target = $region52
      $region51: #{basic_block_forward.2} parent=47 // pred_region
        _
      $region52: #{basic_block_forward.2} parent=47 // pred_fallthru
        _
    $region48: #{basic_block_forward.2} parent=5 // pred_fallthru
      _
    %p1101 = scmp.le.s32.totalorder 2, %s13
    // Predicated region
    $region53: #{basic_block_forward.2} parent=5 // pred_check
      %p1102 = pneg %p1101
    $region54: #{basic_block_forward.2} parent=5 // pred_check_branch
      %1104 = sbr.rel (%p1102) target = $region56
    $region55: #{basic_block_forward.2} parent=5 // pred_region
      %s1105 = ssub.s32 %s13, 2
      // Predicated region
      $region57: #{basic_block_forward.2} parent=55 // pred_check
        %p1106 = pneg %p238
      $region58: #{basic_block_forward.2} parent=55 // pred_check_branch
        %1108 = sbr.rel (%p1106) target = $region60
      $region59: #{basic_block_forward.2} parent=55 // pred_region
        %p1109 = scmp.lt.s32.totalorder %s24, 1
        %s1110 = scalar_select %p1109, %s24, 1
        %p1111 = scmp.lt.s32.totalorder %s25, 0
        %s1112 = scalar_select %p1111, %s25, 0
        %s1113 = smul.addr %s1110, 9
        %s1114 = sadd.s32 %s1112, %s1113
        %s1115 = smul.addr %s1114, 4
        %s1116 = scalar_lea.vmem %s7, %s1115
      $region60: #{basic_block_forward.2} parent=55 // pred_fallthru
        _
    $region56: #{basic_block_forward.2} parent=5 // pred_fallthru
      _
  $region6: #{basic_block_forward.2} parent=0 // loop_footer
    %s17 = sadd.s32 1, %s13
  $region7: #{basic_block_forward.2} parent=0 // loop_footer_branch
    %12 = sbr.rel target = $region3
  $region8: #{basic_block_forward.2} parent=0 // loop_exit
    _

// kernel: basic_block_forward.3
$region0: #{basic_block_forward.3}
  #allocation0 [shape = 'u32[]', space=smem, size = 0x4, offset = 0x4, fixed_abs, tag = 'smem constant byte address 0x4 - core index']
  #allocation1 [shape = 'u32[144,128]{1,0:T(1,128)}', space=vmem, size = 0x12000, scoped, tag = 'internal scratch']
  %s0 = inlined_call_operand.vmem [shape: bf16[2,102,8], index: 0, kind: input, shape index: {}]
  %s1 = inlined_call_operand.vmem [shape: bf16[72,128], index: 1, kind: input, shape index: {}]
  %s2 = inlined_call_operand.vmem [shape: f32[1,128], index: 2, kind: input, shape index: {}]
  %s3 = inlined_call_operand.vmem [shape: f32[1,128], index: 3, kind: input, shape index: {}]
  %s4 = inlined_call_operand.vmem [shape: bf16[2,80,4], index: 4, kind: input, shape index: {}]
  %s5 = inlined_call_operand.vmem [shape: bf16[4,128], index: 5, kind: input, shape index: {}]
  %s6 = inlined_call_operand.vmem [shape: f32[1,128], index: 6, kind: input, shape index: {}]
  %s7 = inlined_call_operand.vmem [shape: f32[1,128], index: 7, kind: input, shape index: {}]
  %s8 = inlined_call_operand.vmem [shape: f32[2,80,128], index: 8, kind: output, shape index: {}]
  %s9 = sld [smem:[#allocation0]]
  $region65: #{basic_block_forward.3} parent=0
    _
  %s11 = ssub.s32 1, %s9
  %s12 = scalar_select 0, %s11, %s9
  loop: start=0, step=1, limit=4
  $region2: #{basic_block_forward.3} parent=0 // loop_pre_header
    _
  $region3: #{basic_block_forward.3} parent=0 // loop_header
    %s14 = sphi 0, %s18
    %p15 = scmp.ge.s32.totalorder %s14, 4
    %s21 = sphi 0, %s33
    %s22 = sphi 0, %s29
    %s23 = sphi 0, %s21
    %s24 = sphi 0, %s22
    %s25 = sphi 0, %s23
    %s26 = sphi 0, %s24
    %s36 = sphi 0, %s38
    %s39 = sphi 0, %s36
    %s40 = sphi 0, %s39
    %s56 = sphi 0, %s40
    %s62 = sphi 0, %s64
    %s65 = sphi 0, %s62
    %s66 = sphi 0, %s65
    %s82 = sphi 0, %s66
    %s88 = sphi 0, %s90
    %s91 = sphi 0, %s88
    %s92 = sphi 0, %s91
    %s108 = sphi 0, %s92
    %s114 = sphi 0, %s116
    %s117 = sphi 0, %s114
    %s118 = sphi 0, %s117
    %s134 = sphi 0, %s118
    %s140 = sphi 0, %s142
    %s143 = sphi 0, %s140
    %s144 = sphi 0, %s143
    %s160 = sphi 0, %s144
    %s166 = sphi 0, %s168
    %s169 = sphi 0, %s166
    %s170 = sphi 0, %s169
    %s186 = sphi 0, %s170
    %s192 = sphi 0, %s194
    %s195 = sphi 0, %s192
    %s196 = sphi 0, %s195
    %s212 = sphi 0, %s196
    %s218 = sphi 0, %s220
    %s221 = sphi 0, %s218
    %s222 = sphi 0, %s221
    %s238 = sphi 0, %s222
    %s246 = sphi 0, %s248
    %s249 = sphi 0, %s246
    %s250 = sphi 0, %s249
    %s266 = sphi 0, %s250
  $region4: #{basic_block_forward.3} parent=0 // loop_header_branch
    %17 = sbr.rel (%p15) target = $region8
  $region5: #{basic_block_forward.3} parent=0 // loop_body
    %s19 = ssub.s32 %s14, 1
    %s20 = ssub.s32 %s14, 2
    %s27 = sadd.s32 1, %s22
    %p28 = scmp.ge.s32.totalorder %s27, 1
    %s29 = scalar_select %p28, 0, %s27
    %s30 = sadd.s32 1, %s21
    %s31 = scalar_select %p28, %s30, %s21
    %p32 = scmp.ge.s32.totalorder %s31, 2
    %s33 = scalar_select %p32, 0, %s31
    %s34 = ssub.s32 %s21, %s33
    %p35 = scmp.eq.s32.totalorder %s34, 0
    %s37 = sadd.s32 %s36, 1
    %s38 = scalar_select %p35, %s36, %s37
    %p41 = pneg %p35
    %p42 = scmp.eq.s32.totalorder %s14, 1
    %p43 = por %p41, %p42
    %p44 = scmp.ne.s32.totalorder %s36, %s39
    %p45 = scmp.eq.s32.totalorder %s14, 0
    %p46 = por %p44, %p45
    %p47 = scmp.ne.s32.totalorder %s36, %s39
    %p48 = scmp.eq.s32.totalorder %s19, 1
    %p49 = por %p47, %p48
    %p50 = scmp.ne.s32.totalorder %s39, %s40
    %p51 = scmp.eq.s32.totalorder %s19, 0
    %p52 = por %p50, %p51
    %p53 = scmp.ne.s32.totalorder %s39, %s40
    %p54 = scmp.eq.s32.totalorder %s20, 1
    %p55 = por %p53, %p54
    %p57 = scmp.ne.s32.totalorder %s40, %s56
    %p58 = scmp.eq.s32.totalorder %s20, 0
    %p59 = por %p57, %p58
    %s60 = ssub.s32 %s22, %s29
    %p61 = scmp.eq.s32.totalorder %s60, 0
    %s63 = sadd.s32 %s62, 1
    %s64 = scalar_select %p61, %s62, %s63
    %p67 = pneg %p61
    %p68 = scmp.eq.s32.totalorder %s14, 1
    %p69 = por %p67, %p68
    %p70 = scmp.ne.s32.totalorder %s62, %s65
    %p71 = scmp.eq.s32.totalorder %s14, 0
    %p72 = por %p70, %p71
    %p73 = scmp.ne.s32.totalorder %s62, %s65
    %p74 = scmp.eq.s32.totalorder %s19, 1
    %p75 = por %p73, %p74
    %p76 = scmp.ne.s32.totalorder %s65, %s66
    %p77 = scmp.eq.s32.totalorder %s19, 0
    %p78 = por %p76, %p77
    %p79 = scmp.ne.s32.totalorder %s65, %s66
    %p80 = scmp.eq.s32.totalorder %s20, 1
    %p81 = por %p79, %p80
    %p83 = scmp.ne.s32.totalorder %s66, %s82
    %p84 = scmp.eq.s32.totalorder %s20, 0
    %p85 = por %p83, %p84
    %s86 = ssub.s32 %s22, %s29
    %p87 = scmp.eq.s32.totalorder %s86, 0
    %s89 = sadd.s32 %s88, 1
    %s90 = scalar_select %p87, %s88, %s89
    %p93 = pneg %p87
    %p94 = scmp.eq.s32.totalorder %s14, 1
    %p95 = por %p93, %p94
    %p96 = scmp.ne.s32.totalorder %s88, %s91
    %p97 = scmp.eq.s32.totalorder %s14, 0
    %p98 = por %p96, %p97
    %p99 = scmp.ne.s32.totalorder %s88, %s91
    %p100 = scmp.eq.s32.totalorder %s19, 1
    %p101 = por %p99, %p100
    %p102 = scmp.ne.s32.totalorder %s91, %s92
    %p103 = scmp.eq.s32.totalorder %s19, 0
    %p104 = por %p102, %p103
    %p105 = scmp.ne.s32.totalorder %s91, %s92
    %p106 = scmp.eq.s32.totalorder %s20, 1
    %p107 = por %p105, %p106
    %p109 = scmp.ne.s32.totalorder %s92, %s108
    %p110 = scmp.eq.s32.totalorder %s20, 0
    %p111 = por %p109, %p110
    %s112 = ssub.s32 %s22, %s29
    %p113 = scmp.eq.s32.totalorder %s112, 0
    %s115 = sadd.s32 %s114, 1
    %s116 = scalar_select %p113, %s114, %s115
    %p119 = pneg %p113
    %p120 = scmp.eq.s32.totalorder %s14, 1
    %p121 = por %p119, %p120
    %p122 = scmp.ne.s32.totalorder %s114, %s117
    %p123 = scmp.eq.s32.totalorder %s14, 0
    %p124 = por %p122, %p123
    %p125 = scmp.ne.s32.totalorder %s114, %s117
    %p126 = scmp.eq.s32.totalorder %s19, 1
    %p127 = por %p125, %p126
    %p128 = scmp.ne.s32.totalorder %s117, %s118
    %p129 = scmp.eq.s32.totalorder %s19, 0
    %p130 = por %p128, %p129
    %p131 = scmp.ne.s32.totalorder %s117, %s118
    %p132 = scmp.eq.s32.totalorder %s20, 1
    %p133 = por %p131, %p132
    %p135 = scmp.ne.s32.totalorder %s118, %s134
    %p136 = scmp.eq.s32.totalorder %s20, 0
    %p137 = por %p135, %p136
    %s138 = ssub.s32 %s21, %s33
    %p139 = scmp.eq.s32.totalorder %s138, 0
    %s141 = sadd.s32 %s140, 1
    %s142 = scalar_select %p139, %s140, %s141
    %p145 = pneg %p139
    %p146 = scmp.eq.s32.totalorder %s14, 1
    %p147 = por %p145, %p146
    %p148 = scmp.ne.s32.totalorder %s140, %s143
    %p149 = scmp.eq.s32.totalorder %s14, 0
    %p150 = por %p148, %p149
    %p151 = scmp.ne.s32.totalorder %s140, %s143
    %p152 = scmp.eq.s32.totalorder %s19, 1
    %p153 = por %p151, %p152
    %p154 = scmp.ne.s32.totalorder %s143, %s144
    %p155 = scmp.eq.s32.totalorder %s19, 0
    %p156 = por %p154, %p155
    %p157 = scmp.ne.s32.totalorder %s143, %s144
    %p158 = scmp.eq.s32.totalorder %s20, 1
    %p159 = por %p157, %p158
    %p161 = scmp.ne.s32.totalorder %s144, %s160
    %p162 = scmp.eq.s32.totalorder %s20, 0
    %p163 = por %p161, %p162
    %s164 = ssub.s32 %s22, %s29
    %p165 = scmp.eq.s32.totalorder %s164, 0
    %s167 = sadd.s32 %s166, 1
    %s168 = scalar_select %p165, %s166, %s167
    %p171 = pneg %p165
    %p172 = scmp.eq.s32.totalorder %s14, 1
    %p173 = por %p171, %p172
    %p174 = scmp.ne.s32.totalorder %s166, %s169
    %p175 = scmp.eq.s32.totalorder %s14, 0
    %p176 = por %p174, %p175
    %p177 = scmp.ne.s32.totalorder %s166, %s169
    %p178 = scmp.eq.s32.totalorder %s19, 1
    %p179 = por %p177, %p178
    %p180 = scmp.ne.s32.totalorder %s169, %s170
    %p181 = scmp.eq.s32.totalorder %s19, 0
    %p182 = por %p180, %p181
    %p183 = scmp.ne.s32.totalorder %s169, %s170
    %p184 = scmp.eq.s32.totalorder %s20, 1
    %p185 = por %p183, %p184
    %p187 = scmp.ne.s32.totalorder %s170, %s186
    %p188 = scmp.eq.s32.totalorder %s20, 0
    %p189 = por %p187, %p188
    %s190 = ssub.s32 %s22, %s29
    %p191 = scmp.eq.s32.totalorder %s190, 0
    %s193 = sadd.s32 %s192, 1
    %s194 = scalar_select %p191, %s192, %s193
    %p197 = pneg %p191
    %p198 = scmp.eq.s32.totalorder %s14, 1
    %p199 = por %p197, %p198
    %p200 = scmp.ne.s32.totalorder %s192, %s195
    %p201 = scmp.eq.s32.totalorder %s14, 0
    %p202 = por %p200, %p201
    %p203 = scmp.ne.s32.totalorder %s192, %s195
    %p204 = scmp.eq.s32.totalorder %s19, 1
    %p205 = por %p203, %p204
    %p206 = scmp.ne.s32.totalorder %s195, %s196
    %p207 = scmp.eq.s32.totalorder %s19, 0
    %p208 = por %p206, %p207
    %p209 = scmp.ne.s32.totalorder %s195, %s196
    %p210 = scmp.eq.s32.totalorder %s20, 1
    %p211 = por %p209, %p210
    %p213 = scmp.ne.s32.totalorder %s196, %s212
    %p214 = scmp.eq.s32.totalorder %s20, 0
    %p215 = por %p213, %p214
    %s216 = ssub.s32 %s22, %s29
    %p217 = scmp.eq.s32.totalorder %s216, 0
    %s219 = sadd.s32 %s218, 1
    %s220 = scalar_select %p217, %s218, %s219
    %p223 = pneg %p217
    %p224 = scmp.eq.s32.totalorder %s14, 1
    %p225 = por %p223, %p224
    %p226 = scmp.ne.s32.totalorder %s218, %s221
    %p227 = scmp.eq.s32.totalorder %s14, 0
    %p228 = por %p226, %p227
    %p229 = scmp.ne.s32.totalorder %s218, %s221
    %p230 = scmp.eq.s32.totalorder %s19, 1
    %p231 = por %p229, %p230
    %p232 = scmp.ne.s32.totalorder %s221, %s222
    %p233 = scmp.eq.s32.totalorder %s19, 0
    %p234 = por %p232, %p233
    %p235 = scmp.ne.s32.totalorder %s221, %s222
    %p236 = scmp.eq.s32.totalorder %s20, 1
    %p237 = por %p235, %p236
    %p239 = scmp.ne.s32.totalorder %s222, %s238
    %p240 = scmp.eq.s32.totalorder %s20, 0
    %p241 = por %p239, %p240
    %s242 = ssub.s32 %s21, %s33
    %s243 = ssub.s32 %s22, %s29
    %s244 = sor.u32 %s242, %s243
    %p245 = scmp.eq.s32.totalorder %s244, 0
    %s247 = sadd.s32 %s246, 1
    %s248 = scalar_select %p245, %s246, %s247
    %p251 = pneg %p245
    %p252 = scmp.eq.s32.totalorder %s14, 1
    %p253 = por %p251, %p252
    %p254 = scmp.ne.s32.totalorder %s246, %s249
    %p255 = scmp.eq.s32.totalorder %s14, 0
    %p256 = por %p254, %p255
    %p257 = scmp.ne.s32.totalorder %s246, %s249
    %p258 = scmp.eq.s32.totalorder %s19, 1
    %p259 = por %p257, %p258
    %p260 = scmp.ne.s32.totalorder %s249, %s250
    %p261 = scmp.eq.s32.totalorder %s19, 0
    %p262 = por %p260, %p261
    %p263 = scmp.ne.s32.totalorder %s249, %s250
    %p264 = scmp.eq.s32.totalorder %s20, 1
    %p265 = por %p263, %p264
    %p267 = scmp.ne.s32.totalorder %s250, %s266
    %p268 = scmp.eq.s32.totalorder %s20, 0
    %p269 = por %p267, %p268
    %p270 = scmp.le.s32.totalorder 1, %s14
    %p271 = scmp.lt.s32.totalorder %s14, 3
    %p272 = pnand %p270, %p271
    %p273 = pneg %p272
    // Predicated region
    $region9: #{basic_block_forward.3} parent=5 // pred_check
      _
    $region10: #{basic_block_forward.3} parent=5 // pred_check_branch
      %275 = sbr.rel (%p272) target = $region12
    $region11: #{basic_block_forward.3} parent=5 // pred_region
      %s276 = ssub.s32 %s14, 1
      // Predicated region
      $region13: #{basic_block_forward.3} parent=11 // pred_check
        %p277 = pneg %p78
      $region14: #{basic_block_forward.3} parent=11 // pred_check_branch
        %279 = sbr.rel (%p277) target = $region16
      $region15: #{basic_block_forward.3} parent=11 // pred_region
        %p280 = scmp.lt.s32.totalorder %s24, 0
        %s281 = scalar_select %p280, %s24, 0
        %s282 = smul.addr %s281, 4
        %s283 = scalar_lea.vmem %s1, %s282
      $region16: #{basic_block_forward.3} parent=11 // pred_fallthru
        _
      // Predicated region
      $region17: #{basic_block_forward.3} parent=11 // pred_check
        %p284 = pneg %p104
      $region18: #{basic_block_forward.3} parent=11 // pred_check_branch
        %286 = sbr.rel (%p284) target = $region20
      $region19: #{basic_block_forward.3} parent=11 // pred_region
        %p287 = scmp.lt.s32.totalorder %s24, 0
        %s288 = scalar_select %p287, %s24, 0
        %s289 = scalar_lea.vmem %s2, %s288
      $region20: #{basic_block_forward.3} parent=11 // pred_fallthru
        _
      // Predicated region
      $region21: #{basic_block_forward.3} parent=11 // pred_check
        %p290 = pneg %p130
      $region22: #{basic_block_forward.3} parent=11 // pred_check_branch
        %292 = sbr.rel (%p290) target = $region24
      $region23: #{basic_block_forward.3} parent=11 // pred_region
        %p293 = scmp.lt.s32.totalorder %s24, 0
        %s294 = scalar_select %p293, %s24, 0
        %s295 = scalar_lea.vmem %s3, %s294
      $region24: #{basic_block_forward.3} parent=11 // pred_fallthru
        _
      // Predicated region
      $region25: #{basic_block_forward.3} parent=11 // pred_check
        %p296 = pneg %p182
      $region26: #{basic_block_forward.3} parent=11 // pred_check_branch
        %298 = sbr.rel (%p296) target = $region28
      $region27: #{basic_block_forward.3} parent=11 // pred_region
        %p299 = scmp.lt.s32.totalorder %s24, 0
        %s300 = scalar_select %p299, %s24, 0
        %s301 = smul.addr %s300, 2
        %s302 = scalar_lea.vmem %s5, %s301
      $region28: #{basic_block_forward.3} parent=11 // pred_fallthru
        _
      // Predicated region
      $region29: #{basic_block_forward.3} parent=11 // pred_check
        %p303 = pneg %p208
      $region30: #{basic_block_forward.3} parent=11 // pred_check_branch
        %305 = sbr.rel (%p303) target = $region32
      $region31: #{basic_block_forward.3} parent=11 // pred_region
        %p306 = scmp.lt.s32.totalorder %s24, 0
        %s307 = scalar_select %p306, %s24, 0
        %s308 = scalar_lea.vmem %s6, %s307
      $region32: #{basic_block_forward.3} parent=11 // pred_fallthru
        _
      // Predicated region
      $region33: #{basic_block_forward.3} parent=11 // pred_check
        %p309 = pneg %p234
      $region34: #{basic_block_forward.3} parent=11 // pred_check_branch
        %311 = sbr.rel (%p309) target = $region36
      $region35: #{basic_block_forward.3} parent=11 // pred_region
        %p312 = scmp.lt.s32.totalorder %s24, 0
        %s313 = scalar_select %p312, %s24, 0
        %s314 = scalar_lea.vmem %s7, %s313
      $region36: #{basic_block_forward.3} parent=11 // pred_fallthru
        _
    $region12: #{basic_block_forward.3} parent=5 // pred_fallthru
      _
    %p315 = scmp.lt.s32.totalorder %s14, 2
    // Predicated region
    $region37: #{basic_block_forward.3} parent=5 // pred_check
      %p316 = pneg %p315
    $region38: #{basic_block_forward.3} parent=5 // pred_check_branch
      %318 = sbr.rel (%p316) target = $region40
    $region39: #{basic_block_forward.3} parent=5 // pred_region
      // Predicated region
      $region41: #{basic_block_forward.3} parent=39 // pred_check
        %p319 = pneg %p46
      $region42: #{basic_block_forward.3} parent=39 // pred_check_branch
        %321 = sbr.rel (%p319) target = $region44
      $region43: #{basic_block_forward.3} parent=39 // pred_region
        %p322 = scmp.lt.s32.totalorder %s21, 1
        %s323 = scalar_select %p322, %s21, 1
        %s324 = smul.addr %s323, 13
        %s325 = smul.addr %s324, 4
        %s326 = scalar_lea.vmem %s0, %s325
      $region44: #{basic_block_forward.3} parent=39 // pred_fallthru
        _
      // Predicated region
      $region45: #{basic_block_forward.3} parent=39 // pred_check
        %p327 = pneg %p150
      $region46: #{basic_block_forward.3} parent=39 // pred_check_branch
        %329 = sbr.rel (%p327) target = $region48
      $region47: #{basic_block_forward.3} parent=39 // pred_region
        %p330 = scmp.lt.s32.totalorder %s21, 1
        %s331 = scalar_select %p330, %s21, 1
        %s332 = smul.addr %s331, 10
        %s333 = smul.addr %s332, 4
        %s334 = scalar_lea.vmem %s4, %s333
      $region48: #{basic_block_forward.3} parent=39 // pred_fallthru
        _
    $region40: #{basic_block_forward.3} parent=5 // pred_fallthru
      _
    %p335 = scmp.le.s32.totalorder 1, %s14
    %p336 = scmp.lt.s32.totalorder %s14, 3
    %p337 = pnand %p335, %p336
    %p338 = pneg %p337
    // Predicated region
    $region49: #{basic_block_forward.3} parent=5 // pred_check
      _
    $region50: #{basic_block_forward.3} parent=5 // pred_check_branch
      %340 = sbr.rel (%p337) target = $region52
    $region51: #{basic_block_forward.3} parent=5 // pred_region
      %s341 = ssub.s32 %s14, 1
      %p342 = scmp.lt.s32.totalorder %s23, 1
      %s343 = scalar_select %p342, %s23, 1
      %s344 = smul.addr %s343, 13
      %s345 = smul.addr %s344, 4
      %s346 = scalar_lea.vmem %s0, %s345
      %p347 = pneg %p52
      %p348 = pneg %p49
      %p349 = scmp.lt.s32.totalorder %s24, 0
      %s350 = scalar_select %p349, %s24, 0
      %s351 = smul.addr %s350, 4
      %s352 = scalar_lea.vmem %s1, %s351
      %p353 = pneg %p78
      %p354 = pneg %p75
      %p355 = scmp.lt.s32.totalorder %s24, 0
      %s356 = scalar_select %p355, %s24, 0
      %s357 = scalar_lea.vmem %s2, %s356
      %p358 = pneg %p104
      %p359 = pneg %p101
      %p360 = scmp.lt.s32.totalorder %s24, 0
      %s361 = scalar_select %p360, %s24, 0
      %s362 = scalar_lea.vmem %s3, %s361
      %p363 = pneg %p130
      %p364 = pneg %p127
      %p365 = scmp.lt.s32.totalorder %s23, 1
      %s366 = scalar_select %p365, %s23, 1
      %s367 = smul.addr %s366, 10
      %s368 = smul.addr %s367, 4
      %s369 = scalar_lea.vmem %s4, %s368
      %p370 = pneg %p156
      %p371 = pneg %p153
      %p372 = scmp.lt.s32.totalorder %s24, 0
      %s373 = scalar_select %p372, %s24, 0
      %s374 = smul.addr %s373, 2
      %s375 = scalar_lea.vmem %s5, %s374
      %p376 = pneg %p182
      %p377 = pneg %p179
      %p378 = scmp.lt.s32.totalorder %s24, 0
      %s379 = scalar_select %p378, %s24, 0
      %s380 = scalar_lea.vmem %s6, %s379
      %p381 = pneg %p208
      %p382 = pneg %p205
      %p383 = scmp.lt.s32.totalorder %s24, 0
      %s384 = scalar_select %p383, %s24, 0
      %s385 = scalar_lea.vmem %s7, %s384
      %p386 = pneg %p234
      %p387 = pneg %p231
      %p388 = pneg %p262
      %p389 = pneg %p259
      %p390 = scmp.lt.s32.totalorder %s23, 1
      %s391 = scalar_select %p390, %s23, 1
      %p392 = scmp.lt.s32.totalorder %s24, 0
      %s393 = scalar_select %p392, %s24, 0
      %s394 = smul.addr %s391, 10
      %s395 = sadd.s32 %s393, %s394
      %s396 = smul.addr %s395, 8
      %s397 = scalar_lea.vmem %s8, %s396
      %p398 = scmp.lt.s32.totalorder %s23, 1
      %s399 = scalar_select %p398, %s23, 1
      %s400 = smul.addr %s399, 13
      %s401 = smul.addr %s400, 4
      %s402 = scalar_lea.vmem %s0, %s401
      %p403 = scmp.lt.s32.totalorder %s24, 0
      %s404 = scalar_select %p403, %s24, 0
      %s405 = smul.addr %s404, 4
      %s406 = scalar_lea.vmem %s1, %s405
      %p407 = scmp.lt.s32.totalorder %s24, 0
      %s408 = scalar_select %p407, %s24, 0
      %s409 = scalar_lea.vmem %s2, %s408
      %p410 = scmp.lt.s32.totalorder %s24, 0
      %s411 = scalar_select %p410, %s24, 0
      %s412 = scalar_lea.vmem %s3, %s411
      %p413 = scmp.lt.s32.totalorder %s23, 1
      %s414 = scalar_select %p413, %s23, 1
      %s415 = smul.addr %s414, 10
      %s416 = smul.addr %s415, 4
      %s417 = scalar_lea.vmem %s4, %s416
      %p418 = scmp.lt.s32.totalorder %s24, 0
      %s419 = scalar_select %p418, %s24, 0
      %s420 = smul.addr %s419, 2
      %s421 = scalar_lea.vmem %s5, %s420
      %p422 = scmp.lt.s32.totalorder %s24, 0
      %s423 = scalar_select %p422, %s24, 0
      %s424 = scalar_lea.vmem %s6, %s423
      %p425 = scmp.lt.s32.totalorder %s24, 0
      %s426 = scalar_select %p425, %s24, 0
      %s427 = scalar_lea.vmem %s7, %s426
      %p428 = scmp.lt.s32.totalorder %s23, 1
      %s429 = scalar_select %p428, %s23, 1
      %p430 = scmp.lt.s32.totalorder %s24, 0
      %s431 = scalar_select %p430, %s24, 0
      %s432 = smul.addr %s429, 10
      %s433 = sadd.s32 %s431, %s432
      %s434 = smul.addr %s433, 8
      %s435 = scalar_lea.vmem %s8, %s434
      %v437 = vld [vmem:[%s402] sm:$0xf]
      %v438 = vld [vmem:[%s402 + $0x4] sm:$0xf]
      %v439 = vld [vmem:[%s402 + $0x8] sm:$0xf]
      %v440 = vld [vmem:[%s402 + $0xc] sm:$0xf]
      %v441 = vld [vmem:[%s402 + $0x10] sm:$0xf]
      %v442 = vld [vmem:[%s402 + $0x14] sm:$0xf]
      %v443 = vld [vmem:[%s402 + $0x18] sm:$0xf]
      %v444 = vld [vmem:[%s402 + $0x1c] sm:$0xf]
      %v445 = vld [vmem:[%s402 + $0x20] sm:$0xf]
      %v446 = vld [vmem:[%s402 + $0x24] sm:$0xf]
      %v447 = vld [vmem:[%s402 + $0x28] sm:$0xf]
      %v448 = vld [vmem:[%s402 + $0x2c] sm:$0xf]
      %v449 = vld [vmem:[%s402 + $0x30] sm:$0x7]
      %v450 = vld [vmem:[%s409] sm:$0x1]
      %v451 = vld [vmem:[%s412] sm:$0x1]
      %v452 = vld [vmem:[%s424] sm:$0x1]
      %v453 = vld [vmem:[%s427] sm:$0x1]
      %v464 = vunpack.c.l.b16 %v437
      %v465 = vunpack.c.l.b16 %v438
      %v466 = vunpack.c.l.b16 %v439
      %v467 = vunpack.c.l.b16 %v440
      %v468 = vunpack.c.l.b16 %v441
      %v469 = vunpack.c.l.b16 %v442
      %v470 = vunpack.c.l.b16 %v443
      %v471 = vunpack.c.l.b16 %v444
      %v472 = vunpack.c.l.b16 %v445
      %v473 = vunpack.c.l.b16 %v446
      %v474 = vpack.c.b16 %v465, %v464
      %v475 = vpack.c.b16 %v467, %v466
      %v476 = vpack.c.b16 %v469, %v468
      %v477 = vpack.c.b16 %v471, %v470
      %v478 = vpack.c.b16 %v473, %v472
      %v480 = vunpack.c.l.b16 %v447
      %v481 = vpack.c.b16 %v480, %v480
      %vm482 = vsmask.f32 7424
      %v484 = vshrl.u32 %v474, 16
      %v486 = vshll.u32 %v474, 16
      %v488 = vrot.slane %v486, 1
      %v489 = vor.u32 %v484, %v488
      %v491 = vshll.u32 %v475, 16
      %v493 = vrot.slane %v491, 1
      %v494 = vsel %vm482, %v489, %v493
      %v495 = vshrl.u32 %v475, 16
      %v497 = vor.u32 %v495, %v493
      %v499 = vshll.u32 %v476, 16
      %v501 = vrot.slane %v499, 1
      %v502 = vsel %vm482, %v497, %v501
      %v503 = vshrl.u32 %v476, 16
      %v505 = vor.u32 %v503, %v501
      %v507 = vshll.u32 %v477, 16
      %v509 = vrot.slane %v507, 1
      %v510 = vsel %vm482, %v505, %v509
      %v511 = vshrl.u32 %v477, 16
      %v513 = vor.u32 %v511, %v509
      %v515 = vshll.u32 %v478, 16
      %v517 = vrot.slane %v515, 1
      %v518 = vsel %vm482, %v513, %v517
      %v519 = vshrl.u32 %v478, 16
      %v521 = vor.u32 %v519, %v517
      %v523 = vshll.u32 %v481, 16
      %v525 = vrot.slane %v523, 1
      %v526 = vsel %vm482, %v521, %v525
      %527 = vrot.lane.b32.xlu0 %v494, 8
      %v528 = vpop.permute.xlu0 %527
      %529 = vrot.lane.b32.xlu0 %v502, 8
      %v530 = vpop.permute.xlu0 %529
      %531 = vrot.lane.b32.xlu0 %v510, 8
      %v532 = vpop.permute.xlu0 %531
      %533 = vrot.lane.b32.xlu0 %v518, 8
      %v534 = vpop.permute.xlu0 %533
      %535 = vrot.lane.b32.xlu0 %v526, 8
      %v536 = vpop.permute.xlu0 %535
      %vm537 = vcmask 1046528
      %v538 = vrot.slane %v474, 1
      %v539 = vrot.slane %v475, 1
      %v540 = vsel %vm537, %v538, %v539
      %v541 = vrot.slane %v476, 1
      %v542 = vsel %vm537, %v539, %v541
      %v543 = vrot.slane %v477, 1
      %v544 = vsel %vm537, %v541, %v543
      %v545 = vrot.slane %v478, 1
      %v546 = vsel %vm537, %v543, %v545
      %v547 = vrot.slane %v481, 1
      %v548 = vsel %vm537, %v545, %v547
      %549 = vrot.lane.b32.xlu0 %v540, 16
      %v550 = vpop.permute.xlu0 %549
      %551 = vrot.lane.b32.xlu0 %v542, 16
      %v552 = vpop.permute.xlu0 %551
      %553 = vrot.lane.b32.xlu0 %v544, 16
      %v554 = vpop.permute.xlu0 %553
      %555 = vrot.lane.b32.xlu0 %v546, 16
      %v556 = vpop.permute.xlu0 %555
      %557 = vrot.lane.b32.xlu0 %v548, 16
      %v558 = vpop.permute.xlu0 %557
      %v560 = vunpack.c.l.b16 %v448
      %v561 = vpack.c.b16 %v466, %v465
      %v562 = vpack.c.b16 %v468, %v467
      %v563 = vpack.c.b16 %v470, %v469
      %v564 = vpack.c.b16 %v472, %v471
      %v565 = vpack.c.b16 %v480, %v473
      %v566 = vpack.c.b16 %v560, %v560
      %v567 = vrot.slane %v561, 1
      %v568 = vrot.slane %v562, 1
      %v569 = vsel %vm537, %v567, %v568
      %v570 = vrot.slane %v563, 1
      %v571 = vsel %vm537, %v568, %v570
      %v572 = vrot.slane %v564, 1
      %v573 = vsel %vm537, %v570, %v572
      %v574 = vrot.slane %v565, 1
      %v575 = vsel %vm537, %v572, %v574
      %v576 = vrot.slane %v566, 1
      %v577 = vsel %vm537, %v574, %v576
      %578 = vrot.lane.b32.xlu0 %v569, 24
      %v579 = vpop.permute.xlu0 %578
      %580 = vrot.lane.b32.xlu0 %v571, 24
      %v581 = vpop.permute.xlu0 %580
      %582 = vrot.lane.b32.xlu0 %v573, 24
      %v583 = vpop.permute.xlu0 %582
      %584 = vrot.lane.b32.xlu0 %v575, 24
      %v585 = vpop.permute.xlu0 %584
      %586 = vrot.lane.b32.xlu0 %v577, 24
      %v587 = vpop.permute.xlu0 %586
      %vm588 = vsmask.f32 6400
      %v590 = vshrl.u32 %v561, 16
      %v592 = vrot.slane %v590, 1
      %v593 = vshll.u32 %v561, 16
      %v595 = vrot.slane %v593, 2
      %v596 = vor.u32 %v592, %v595
      %v598 = vshrl.u32 %v562, 16
      %v600 = vrot.slane %v598, 1
      %v601 = vshll.u32 %v562, 16
      %v603 = vrot.slane %v601, 2
      %v604 = vor.u32 %v600, %v603
      %v605 = vsel %vm588, %v596, %v604
      %v607 = vshrl.u32 %v563, 16
      %v609 = vrot.slane %v607, 1
      %v610 = vshll.u32 %v563, 16
      %v612 = vrot.slane %v610, 2
      %v613 = vor.u32 %v609, %v612
      %v614 = vsel %vm588, %v604, %v613
      %v616 = vshrl.u32 %v564, 16
      %v618 = vrot.slane %v616, 1
      %v619 = vshll.u32 %v564, 16
      %v621 = vrot.slane %v619, 2
      %v622 = vor.u32 %v618, %v621
      %v623 = vsel %vm588, %v613, %v622
      %v625 = vshrl.u32 %v565, 16
      %v627 = vrot.slane %v625, 1
      %v628 = vshll.u32 %v565, 16
      %v630 = vrot.slane %v628, 2
      %v631 = vor.u32 %v627, %v630
      %v632 = vsel %vm588, %v622, %v631
      %v634 = vshrl.u32 %v566, 16
      %v636 = vrot.slane %v634, 1
      %v637 = vshll.u32 %v566, 16
      %v639 = vrot.slane %v637, 2
      %v640 = vor.u32 %v636, %v639
      %v641 = vsel %vm588, %v631, %v640
      %642 = vrot.lane.b32.xlu0 %v605, 32
      %v643 = vpop.permute.xlu0 %642
      %644 = vrot.lane.b32.xlu0 %v614, 32
      %v645 = vpop.permute.xlu0 %644
      %646 = vrot.lane.b32.xlu0 %v623, 32
      %v647 = vpop.permute.xlu0 %646
      %648 = vrot.lane.b32.xlu0 %v632, 32
      %v649 = vpop.permute.xlu0 %648
      %650 = vrot.lane.b32.xlu0 %v641, 32
      %v651 = vpop.permute.xlu0 %650
      %vm652 = vcmask 1045504
      %v653 = vrot.slane %v561, 2
      %v654 = vrot.slane %v562, 2
      %v655 = vsel %vm652, %v653, %v654
      %v656 = vrot.slane %v563, 2
      %v657 = vsel %vm652, %v654, %v656
      %v658 = vrot.slane %v564, 2
      %v659 = vsel %vm652, %v656, %v658
      %v660 = vrot.slane %v565, 2
      %v661 = vsel %vm652, %v658, %v660
      %v662 = vrot.slane %v566, 2
      %v663 = vsel %vm652, %v660, %v662
      %664 = vrot.lane.b32.xlu0 %v655, 40
      %v665 = vpop.permute.xlu0 %664
      %666 = vrot.lane.b32.xlu0 %v657, 40
      %v667 = vpop.permute.xlu0 %666
      %668 = vrot.lane.b32.xlu0 %v659, 40
      %v669 = vpop.permute.xlu0 %668
      %670 = vrot.lane.b32.xlu0 %v661, 40
      %v671 = vpop.permute.xlu0 %670
      %672 = vrot.lane.b32.xlu0 %v663, 40
      %v673 = vpop.permute.xlu0 %672
      %v675 = vunpack.c.l.b16 %v449
      %v676 = vpack.c.b16 %v560, %v480
      %v677 = vpack.c.b16 %v675, %v675
      %v678 = vrot.slane %v475, 2
      %v679 = vrot.slane %v476, 2
      %v680 = vsel %vm652, %v678, %v679
      %v681 = vrot.slane %v477, 2
      %v682 = vsel %vm652, %v679, %v681
      %v683 = vrot.slane %v478, 2
      %v684 = vsel %vm652, %v681, %v683
      %v685 = vrot.slane %v676, 2
      %v686 = vsel %vm652, %v683, %v685
      %v687 = vrot.slane %v677, 2
      %v688 = vsel %vm652, %v685, %v687
      %689 = vrot.lane.b32.xlu0 %v680, 48
      %v690 = vpop.permute.xlu0 %689
      %691 = vrot.lane.b32.xlu0 %v682, 48
      %v692 = vpop.permute.xlu0 %691
      %693 = vrot.lane.b32.xlu0 %v684, 48
      %v694 = vpop.permute.xlu0 %693
      %695 = vrot.lane.b32.xlu0 %v686, 48
      %v696 = vpop.permute.xlu0 %695
      %697 = vrot.lane.b32.xlu0 %v688, 48
      %v698 = vpop.permute.xlu0 %697
      %vm699 = vsmask.f32 5376
      %v700 = vrot.slane %v495, 2
      %v701 = vrot.slane %v491, 3
      %v702 = vor.u32 %v700, %v701
      %v703 = vrot.slane %v503, 2
      %v704 = vrot.slane %v499, 3
      %v705 = vor.u32 %v703, %v704
      %v706 = vsel %vm699, %v702, %v705
      %v707 = vrot.slane %v511, 2
      %v708 = vrot.slane %v507, 3
      %v709 = vor.u32 %v707, %v708
      %v710 = vsel %vm699, %v705, %v709
      %v711 = vrot.slane %v519, 2
      %v712 = vrot.slane %v515, 3
      %v713 = vor.u32 %v711, %v712
      %v714 = vsel %vm699, %v709, %v713
      %v716 = vshrl.u32 %v676, 16
      %v718 = vrot.slane %v716, 2
      %v719 = vshll.u32 %v676, 16
      %v721 = vrot.slane %v719, 3
      %v722 = vor.u32 %v718, %v721
      %v723 = vsel %vm699, %v713, %v722
      %v725 = vshrl.u32 %v677, 16
      %v727 = vrot.slane %v725, 2
      %v728 = vshll.u32 %v677, 16
      %v730 = vrot.slane %v728, 3
      %v731 = vor.u32 %v727, %v730
      %v732 = vsel %vm699, %v722, %v731
      %733 = vrot.lane.b32.xlu0 %v706, 56
      %v734 = vpop.permute.xlu0 %733
      %735 = vrot.lane.b32.xlu0 %v710, 56
      %v736 = vpop.permute.xlu0 %735
      %737 = vrot.lane.b32.xlu0 %v714, 56
      %v738 = vpop.permute.xlu0 %737
      %739 = vrot.lane.b32.xlu0 %v723, 56
      %v740 = vpop.permute.xlu0 %739
      %741 = vrot.lane.b32.xlu0 %v732, 56
      %v742 = vpop.permute.xlu0 %741
      %vm743 = vcmask 1044480
      %v744 = vrot.slane %v475, 3
      %v745 = vrot.slane %v476, 3
      %v746 = vsel %vm743, %v744, %v745
      %v747 = vrot.slane %v477, 3
      %v748 = vsel %vm743, %v745, %v747
      %v749 = vrot.slane %v478, 3
      %v750 = vsel %vm743, %v747, %v749
      %v751 = vrot.slane %v676, 3
      %v752 = vsel %vm743, %v749, %v751
      %v753 = vrot.slane %v677, 3
      %v754 = vsel %vm743, %v751, %v753
      %755 = vrot.lane.b32.xlu0 %v746, 64
      %v756 = vpop.permute.xlu0 %755
      %757 = vrot.lane.b32.xlu0 %v748, 64
      %v758 = vpop.permute.xlu0 %757
      %759 = vrot.lane.b32.xlu0 %v750, 64
      %v760 = vpop.permute.xlu0 %759
      %761 = vrot.lane.b32.xlu0 %v752, 64
      %v762 = vpop.permute.xlu0 %761
      %763 = vrot.lane.b32.xlu0 %v754, 64
      %v764 = vpop.permute.xlu0 %763
      %vm765 = vcmask 64512
      %v767 = vsel %vm765, %v474, %v528
      %v769 = vsel %vm765, %v475, %v530
      %v771 = vsel %vm765, %v476, %v532
      %v773 = vsel %vm765, %v477, %v534
      %v775 = vsel %vm765, %v478, %v536
      %vm776 = vcmask 130048
      %v778 = vsel %vm776, %v767, %v550
      %v780 = vsel %vm776, %v769, %v552
      %v782 = vsel %vm776, %v771, %v554
      %v784 = vsel %vm776, %v773, %v556
      %v786 = vsel %vm776, %v775, %v558
      %vm787 = vcmask 195584
      %v789 = vsel %vm787, %v778, %v579
      %v791 = vsel %vm787, %v780, %v581
      %v793 = vsel %vm787, %v782, %v583
      %v795 = vsel %vm787, %v784, %v585
      %v797 = vsel %vm787, %v786, %v587
      %vm798 = vcmask 261120
      %v800 = vsel %vm798, %v789, %v643
      %v802 = vsel %vm798, %v791, %v645
      %v804 = vsel %vm798, %v793, %v647
      %v806 = vsel %vm798, %v795, %v649
      %v808 = vsel %vm798, %v797, %v651
      %vm809 = vcmask 326656
      %v811 = vsel %vm809, %v800, %v665
      %v813 = vsel %vm809, %v802, %v667
      %v815 = vsel %vm809, %v804, %v669
      %v817 = vsel %vm809, %v806, %v671
      %v819 = vsel %vm809, %v808, %v673
      %vm820 = vcmask 392192
      %v822 = vsel %vm820, %v811, %v690
      %v824 = vsel %vm820, %v813, %v692
      %v826 = vsel %vm820, %v815, %v694
      %v828 = vsel %vm820, %v817, %v696
      %v830 = vsel %vm820, %v819, %v698
      %vm831 = vcmask 457728
      %v833 = vsel %vm831, %v822, %v734
      %v835 = vsel %vm831, %v824, %v736
      %v837 = vsel %vm831, %v826, %v738
      %v839 = vsel %vm831, %v828, %v740
      %v841 = vsel %vm831, %v830, %v742
      %vm842 = vcmask 523264
      %v844 = vsel %vm842, %v833, %v756
      %v846 = vsel %vm842, %v835, %v758
      %v848 = vsel %vm842, %v837, %v760
      %v850 = vsel %vm842, %v839, %v762
      %v852 = vsel %vm842, %v841, %v764
      %v853 = vld [vmem:[%s406] sm:$0xf]
      %v854 = vld [vmem:[%s406 + $0x4] sm:$0xf]
      %v855 = vld [vmem:[%s406 + $0x8] sm:$0xf]
      %v856 = vld [vmem:[%s406 + $0xc] sm:$0xf]
      %v857 = vld [vmem:[%s406 + $0x10] sm:$0xf]
      %v858 = vld [vmem:[%s406 + $0x14] sm:$0xf]
      %v859 = vld [vmem:[%s406 + $0x18] sm:$0xf]
      %v860 = vld [vmem:[%s406 + $0x1c] sm:$0xf]
      %v861 = vld [vmem:[%s406 + $0x20] sm:$0xf]
      %v871 = vunpack.c.l.b16 %v853
      %v872 = vunpack.c.l.b16 %v854
      %v873 = vunpack.c.l.b16 %v855
      %v874 = vunpack.c.l.b16 %v856
      %v875 = vunpack.c.l.b16 %v857
      %v876 = vunpack.c.l.b16 %v858
      %v877 = vunpack.c.l.b16 %v859
      %v878 = vunpack.c.l.b16 %v860
      %v879 = vunpack.c.l.b16 %v861
      %v880 = vpack.c.b16 %v872, %v871
      %v881 = vpack.c.b16 %v874, %v873
      %v882 = vpack.c.b16 %v876, %v875
      %v883 = vpack.c.b16 %v878, %v877
      %v884 = vpack.c.b16 %v879, %v879
      %vm889 = vcmask 588800
      %v890 = vsel %vm889, %v844, 0
      %v892 = vsel %vm889, %v846, 0
      %v894 = vsel %vm889, %v848, 0
      %v896 = vsel %vm889, %v850, 0
      %v898 = vsel %vm889, %v852, 0
      %vm900 = vcmask 1043456
      %v902 = vsel %vm900, %v884, 0
      %904 = vmatprep.subr.bf16.mxu0 0
      %905 = vmatpush1.bf16.msra.mxu0 0
      %906 = vmatprep.subr.bf16.mxu0 0
      %907 = vmatpush1.bf16.msra.mxu0 0
      %908 = vmatprep.subr.bf16.mxu0 0
      %909 = vmatpush1.bf16.msra.mxu0 0
      %910 = vmatprep.subr.bf16.mxu0 0
      %911 = vmatpush1.bf16.msra.mxu0 %v902
      %912 = vmatprep.subr.bf16.mxu0 0
      %913 = vmatpush1.bf16.msra.mxu0 %v883
      %914 = vmatprep.subr.bf16.mxu0 0
      %915 = vmatpush1.bf16.msra.mxu0 %v882
      %916 = vmatprep.subr.bf16.mxu0 0
      %917 = vmatpush1.bf16.msra.mxu0 %v881
      %918 = vmatprep.subr.bf16.mxu0 0
      %919 = vmatpush1.bf16.msra.mxu0 %v880
      %920 = vmatprep.subr.bf16.mxu0 0
      %921 = vmatpush2.bf16.msra.mxu0 0
      %922 = vmatprep.subr.bf16.mxu0 0
      %923 = vmatpush2.bf16.msra.mxu0 0
      %924 = vmatprep.subr.bf16.mxu0 0
      %925 = vmatpush2.bf16.msra.mxu0 0
      %926 = vmatprep.subr.bf16.mxu0 0
      %927 = vmatpush2.bf16.msra.mxu0 0
      %928 = vmatprep.subr.bf16.mxu0 0
      %929 = vmatpush2.bf16.msra.mxu0 0
      %930 = vmatprep.subr.bf16.mxu0 0
      %931 = vmatpush2.bf16.msra.mxu0 0
      %932 = vmatprep.subr.bf16.mxu0 0
      %933 = vmatpush2.bf16.msra.mxu0 0
      %934 = vmatprep.subr.bf16.mxu0 0
      %935 = vmatpush2.bf16.msra.mxu0 0
      %936 = vmatprep.mubr.bf16.mxu0 0
      %937 = vmatmul.mubr.bf16.gmra.mxu0 %v890
      %v938 = vpop.f32.mrf.mxu0
      %v939 = vadd.f32 0.0, %v938
      %v940 = vpop.f32.mrf.mxu0
      %v941 = vpop.f32.mrf.mxu0
      %v942 = vadd.f32 0.0, %v941
      %v943 = vpop.f32.mrf.mxu0
      %944 = vmatprep.mubr.bf16.mxu0 0
      %945 = vmatmul.mubr.bf16.gmra.mxu0 %v892
      %v946 = vpop.f32.mrf.mxu0
      %v947 = vadd.f32 0.0, %v946
      %v948 = vpop.f32.mrf.mxu0
      %v949 = vpop.f32.mrf.mxu0
      %v950 = vadd.f32 0.0, %v949
      %v951 = vpop.f32.mrf.mxu0
      %952 = vmatprep.mubr.bf16.mxu0 0
      %953 = vmatmul.mubr.bf16.gmra.mxu0 %v894
      %v954 = vpop.f32.mrf.mxu0
      %v955 = vadd.f32 0.0, %v954
      %v956 = vpop.f32.mrf.mxu0
      %v957 = vpop.f32.mrf.mxu0
      %v958 = vadd.f32 0.0, %v957
      %v959 = vpop.f32.mrf.mxu0
      %960 = vmatprep.mubr.bf16.mxu0 0
      %961 = vmatmul.mubr.bf16.gmra.mxu0 %v896
      %v962 = vpop.f32.mrf.mxu0
      %v963 = vadd.f32 0.0, %v962
      %v964 = vpop.f32.mrf.mxu0
      %v965 = vpop.f32.mrf.mxu0
      %v966 = vadd.f32 0.0, %v965
      %v967 = vpop.f32.mrf.mxu0
      %968 = vmatprep.mubr.bf16.mxu0 0
      %969 = vmatmul.mubr.bf16.gmra.mxu0 %v898
      %v970 = vpop.f32.mrf.mxu0
      %v971 = vadd.f32 0.0, %v970
      %v972 = vpop.f32.mrf.mxu0
      %v973 = vpop.f32.mrf.mxu0
      %v974 = vadd.f32 0.0, %v973
      %v975 = vpop.f32.mrf.mxu0
      %976 = vdwg.mxu0
      %v978 = vlaneseq
      %v979 = vshrl.u32 %v978, 7
      %v980 = vsub.s32 0, %v979
      %v981 = vrot.slane %v450, %v980
      %v983 = vmul.f32 %v939, %v981
      %v984 = vmul.f32 %v942, %v981
      %v985 = vmul.f32 %v947, %v981
      %v986 = vmul.f32 %v950, %v981
      %v987 = vmul.f32 %v955, %v981
      %v988 = vmul.f32 %v958, %v981
      %v989 = vmul.f32 %v963, %v981
      %v990 = vmul.f32 %v966, %v981
      %v991 = vmul.f32 %v971, %v981
      %v992 = vmul.f32 %v974, %v981
      %v994 = vlaneseq
      %v995 = vshrl.u32 %v994, 7
      %v996 = vsub.s32 0, %v995
      %v997 = vrot.slane %v451, %v996
      %v999 = vadd.f32 %v983, %v997
      %v1000 = vadd.f32 %v984, %v997
      %v1001 = vadd.f32 %v985, %v997
      %v1002 = vadd.f32 %v986, %v997
      %v1003 = vadd.f32 %v987, %v997
      %v1004 = vadd.f32 %v988, %v997
      %v1005 = vadd.f32 %v989, %v997
      %v1006 = vadd.f32 %v990, %v997
      %v1007 = vadd.f32 %v991, %v997
      %v1008 = vadd.f32 %v992, %v997
      %v1009 = vld [vmem:[%s417] sm:$0xf]
      %v1010 = vld [vmem:[%s417 + $0x4] sm:$0xf]
      %v1011 = vld [vmem:[%s417 + $0x8] sm:$0xf]
      %v1012 = vld [vmem:[%s417 + $0xc] sm:$0xf]
      %v1013 = vld [vmem:[%s417 + $0x10] sm:$0xf]
      %v1014 = vld [vmem:[%s417 + $0x14] sm:$0xf]
      %v1015 = vld [vmem:[%s417 + $0x18] sm:$0xf]
      %v1016 = vld [vmem:[%s417 + $0x1c] sm:$0xf]
      %v1017 = vld [vmem:[%s417 + $0x20] sm:$0xf]
      %v1018 = vld [vmem:[%s417 + $0x24] sm:$0xf]
      %v1019 = vld [vmem:[%s421] sm:$0x3]
      %v1030 = vunpack.c.l.b16 %v1009
      %v1031 = vunpack.c.l.b16 %v1010
      %v1032 = vunpack.c.l.b16 %v1011
      %v1033 = vunpack.c.l.b16 %v1012
      %v1034 = vunpack.c.l.b16 %v1013
      %v1035 = vunpack.c.l.b16 %v1014
      %v1036 = vunpack.c.l.b16 %v1015
      %v1037 = vunpack.c.l.b16 %v1016
      %v1038 = vunpack.c.l.b16 %v1017
      %v1039 = vunpack.c.l.b16 %v1018
      %v1040 = vpack.c.b16 %v1031, %v1030
      %v1041 = vpack.c.b16 %v1033, %v1032
      %v1042 = vpack.c.b16 %v1035, %v1034
      %v1043 = vpack.c.b16 %v1037, %v1036
      %v1044 = vpack.c.b16 %v1039, %v1038
      %vm1045 = vcmask 31744
      %v1047 = vsel %vm1045, %v1040, 0
      %v1050 = vsel %vm1045, %v1041, 0
      %v1053 = vsel %vm1045, %v1042, 0
      %v1056 = vsel %vm1045, %v1043, 0
      %v1059 = vsel %vm1045, %v1044, 0
      %vm1061 = vcmask 1041408
      %v1063 = vsel %vm1061, %v1019, 0
      %1065 = vmatprep.subr.bf16.mxu0 0
      %1066 = vmatpush1.bf16.msra.mxu0 0
      %1067 = vmatprep.subr.bf16.mxu0 0
      %1068 = vmatpush1.bf16.msra.mxu0 0
      %1069 = vmatprep.subr.bf16.mxu0 0
      %1070 = vmatpush1.bf16.msra.mxu0 0
      %1071 = vmatprep.subr.bf16.mxu0 0
      %1072 = vmatpush1.bf16.msra.mxu0 0
      %1073 = vmatprep.subr.bf16.mxu0 0
      %1074 = vmatpush1.bf16.msra.mxu0 0
      %1075 = vmatprep.subr.bf16.mxu0 0
      %1076 = vmatpush1.bf16.msra.mxu0 0
      %1077 = vmatprep.subr.bf16.mxu0 0
      %1078 = vmatpush1.bf16.msra.mxu0 0
      %1079 = vmatprep.subr.bf16.mxu0 0
      %1080 = vmatpush1.bf16.msra.mxu0 %v1063
      %1081 = vmatprep.subr.bf16.mxu0 0
      %1082 = vmatpush2.bf16.msra.mxu0 0
      %1083 = vmatprep.subr.bf16.mxu0 0
      %1084 = vmatpush2.bf16.msra.mxu0 0
      %1085 = vmatprep.subr.bf16.mxu0 0
      %1086 = vmatpush2.bf16.msra.mxu0 0
      %1087 = vmatprep.subr.bf16.mxu0 0
      %1088 = vmatpush2.bf16.msra.mxu0 0
      %1089 = vmatprep.subr.bf16.mxu0 0
      %1090 = vmatpush2.bf16.msra.mxu0 0
      %1091 = vmatprep.subr.bf16.mxu0 0
      %1092 = vmatpush2.bf16.msra.mxu0 0
      %1093 = vmatprep.subr.bf16.mxu0 0
      %1094 = vmatpush2.bf16.msra.mxu0 0
      %1095 = vmatprep.subr.bf16.mxu0 0
      %1096 = vmatpush2.bf16.msra.mxu0 0
      %1097 = vmatprep.mubr.bf16.mxu0 0
      %1098 = vmatmul.mubr.bf16.gmra.mxu0 %v1047
      %v1099 = vpop.f32.mrf.mxu0
      %v1100 = vadd.f32 0.0, %v1099
      %v1101 = vpop.f32.mrf.mxu0
      %v1102 = vpop.f32.mrf.mxu0
      %v1103 = vadd.f32 0.0, %v1102
      %v1104 = vpop.f32.mrf.mxu0
      %1105 = vmatprep.mubr.bf16.mxu0 0
      %1106 = vmatmul.mubr.bf16.gmra.mxu0 %v1050
      %v1107 = vpop.f32.mrf.mxu0
      %v1108 = vadd.f32 0.0, %v1107
      %v1109 = vpop.f32.mrf.mxu0
      %v1110 = vpop.f32.mrf.mxu0
      %v1111 = vadd.f32 0.0, %v1110
      %v1112 = vpop.f32.mrf.mxu0
      %1113 = vmatprep.mubr.bf16.mxu0 0
      %1114 = vmatmul.mubr.bf16.gmra.mxu0 %v1053
      %v1115 = vpop.f32.mrf.mxu0
      %v1116 = vadd.f32 0.0, %v1115
      %v1117 = vpop.f32.mrf.mxu0
      %v1118 = vpop.f32.mrf.mxu0
      %v1119 = vadd.f32 0.0, %v1118
      %v1120 = vpop.f32.mrf.mxu0
      %1121 = vmatprep.mubr.bf16.mxu0 0
      %1122 = vmatmul.mubr.bf16.gmra.mxu0 %v1056
      %v1123 = vpop.f32.mrf.mxu0
      %v1124 = vadd.f32 0.0, %v1123
      %v1125 = vpop.f32.mrf.mxu0
      %v1126 = vpop.f32.mrf.mxu0
      %v1127 = vadd.f32 0.0, %v1126
      %v1128 = vpop.f32.mrf.mxu0
      %1129 = vmatprep.mubr.bf16.mxu0 0
      %1130 = vmatmul.mubr.bf16.gmra.mxu0 %v1059
      %v1131 = vpop.f32.mrf.mxu0
      %v1132 = vadd.f32 0.0, %v1131
      %v1133 = vpop.f32.mrf.mxu0
      %v1134 = vpop.f32.mrf.mxu0
      %v1135 = vadd.f32 0.0, %v1134
      %v1136 = vpop.f32.mrf.mxu0
      %1137 = vdwg.mxu0
      %v1139 = vlaneseq
      %v1140 = vshrl.u32 %v1139, 7
      %v1141 = vsub.s32 0, %v1140
      %v1142 = vrot.slane %v452, %v1141
      %v1144 = vmul.f32 %v1100, %v1142
      %v1145 = vmul.f32 %v1103, %v1142
      %v1146 = vmul.f32 %v1108, %v1142
      %v1147 = vmul.f32 %v1111, %v1142
      %v1148 = vmul.f32 %v1116, %v1142
      %v1149 = vmul.f32 %v1119, %v1142
      %v1150 = vmul.f32 %v1124, %v1142
      %v1151 = vmul.f32 %v1127, %v1142
      %v1152 = vmul.f32 %v1132, %v1142
      %v1153 = vmul.f32 %v1135, %v1142
      %v1155 = vlaneseq
      %v1156 = vshrl.u32 %v1155, 7
      %v1157 = vsub.s32 0, %v1156
      %v1158 = vrot.slane %v453, %v1157
      %v1160 = vadd.f32 %v1144, %v1158
      %v1161 = vadd.f32 %v1145, %v1158
      %v1162 = vadd.f32 %v1146, %v1158
      %v1163 = vadd.f32 %v1147, %v1158
      %v1164 = vadd.f32 %v1148, %v1158
      %v1165 = vadd.f32 %v1149, %v1158
      %v1166 = vadd.f32 %v1150, %v1158
      %v1167 = vadd.f32 %v1151, %v1158
      %v1168 = vadd.f32 %v1152, %v1158
      %v1169 = vadd.f32 %v1153, %v1158
      %v1170 = vadd.f32 %v999, %v1160
      %v1171 = vadd.f32 %v1000, %v1161
      %v1172 = vadd.f32 %v1001, %v1162
      %v1173 = vadd.f32 %v1002, %v1163
      %v1174 = vadd.f32 %v1003, %v1164
      %v1175 = vadd.f32 %v1004, %v1165
      %v1176 = vadd.f32 %v1005, %v1166
      %v1177 = vadd.f32 %v1006, %v1167
      %v1178 = vadd.f32 %v1007, %v1168
      %v1179 = vadd.f32 %v1008, %v1169
      %v1180 = vmax.f32 %v1170, 0.0
      %v1181 = vmax.f32 %v1171, 0.0
      %v1182 = vmax.f32 %v1172, 0.0
      %v1183 = vmax.f32 %v1173, 0.0
      %v1184 = vmax.f32 %v1174, 0.0
      %v1185 = vmax.f32 %v1175, 0.0
      %v1186 = vmax.f32 %v1176, 0.0
      %v1187 = vmax.f32 %v1177, 0.0
      %v1188 = vmax.f32 %v1178, 0.0
      %v1189 = vmax.f32 %v1179, 0.0
      %1190 = vst [vmem:[%s435] sm:$0xff] %v1180
      %1191 = vst [vmem:[%s435 + $0x8] sm:$0xff] %v1181
      %1192 = vst [vmem:[%s435 + $0x10] sm:$0xff] %v1182
      %1193 = vst [vmem:[%s435 + $0x18] sm:$0xff] %v1183
      %1194 = vst [vmem:[%s435 + $0x20] sm:$0xff] %v1184
      %1195 = vst [vmem:[%s435 + $0x28] sm:$0xff] %v1185
      %1196 = vst [vmem:[%s435 + $0x30] sm:$0xff] %v1186
      %1197 = vst [vmem:[%s435 + $0x38] sm:$0xff] %v1187
      %1198 = vst [vmem:[%s435 + $0x40] sm:$0xff] %v1188
      %1199 = vst [vmem:[%s435 + $0x48] sm:$0xff] %v1189
      %p1200 = scmp.lt.s32.totalorder %s23, 1
      %s1201 = scalar_select %p1200, %s23, 1
      %p1202 = scmp.lt.s32.totalorder %s24, 0
      %s1203 = scalar_select %p1202, %s24, 0
      %s1204 = smul.addr %s1201, 10
      %s1205 = sadd.s32 %s1203, %s1204
      %s1206 = smul.addr %s1205, 8
      %s1207 = scalar_lea.vmem %s8, %s1206
      // Predicated region
      $region53: #{basic_block_forward.3} parent=51 // pred_check
        %p1208 = pneg %p259
      $region54: #{basic_block_forward.3} parent=51 // pred_check_branch
        %1210 = sbr.rel (%p1208) target = $region56
      $region55: #{basic_block_forward.3} parent=51 // pred_region
        _
      $region56: #{basic_block_forward.3} parent=51 // pred_fallthru
        _
    $region52: #{basic_block_forward.3} parent=5 // pred_fallthru
      _
    %p1211 = scmp.le.s32.totalorder 2, %s14
    // Predicated region
    $region57: #{basic_block_forward.3} parent=5 // pred_check
      %p1212 = pneg %p1211
    $region58: #{basic_block_forward.3} parent=5 // pred_check_branch
      %1214 = sbr.rel (%p1212) target = $region60
    $region59: #{basic_block_forward.3} parent=5 // pred_region
      %s1215 = ssub.s32 %s14, 2
      // Predicated region
      $region61: #{basic_block_forward.3} parent=59 // pred_check
        %p1216 = pneg %p265
      $region62: #{basic_block_forward.3} parent=59 // pred_check_branch
        %1218 = sbr.rel (%p1216) target = $region64
      $region63: #{basic_block_forward.3} parent=59 // pred_region
        %p1219 = scmp.lt.s32.totalorder %s25, 1
        %s1220 = scalar_select %p1219, %s25, 1
        %p1221 = scmp.lt.s32.totalorder %s26, 0
        %s1222 = scalar_select %p1221, %s26, 0
        %s1223 = smul.addr %s1220, 10
        %s1224 = sadd.s32 %s1222, %s1223
        %s1225 = smul.addr %s1224, 8
        %s1226 = scalar_lea.vmem %s8, %s1225
      $region64: #{basic_block_forward.3} parent=59 // pred_fallthru
        _
    $region60: #{basic_block_forward.3} parent=5 // pred_fallthru
      _
  $region6: #{basic_block_forward.3} parent=0 // loop_footer
    %s18 = sadd.s32 1, %s14
  $region7: #{basic_block_forward.3} parent=0 // loop_footer_branch
    %13 = sbr.rel target = $region3
  $region8: #{basic_block_forward.3} parent=0 // loop_exit
    _

</llo_original>
